<compile_context>
chip_gen: v7x
topology: tpu7x:2x2x1
jax: 0.10.0
libtpu: 0.0.40
codegen_flags: <defaults>
</compile_context>

<pallas_src>
import functools
import math

import jax
import jax.numpy as jnp
from jax import lax
from jax.experimental import pallas as pl
from jax.experimental.pallas import tpu as pltpu


# ----------------------------------------------------------------------------
# Fused kernel: one batch element per grid step
# ----------------------------------------------------------------------------
def _fused_cross_attn_kernel(x_ref, m_ref, wq_ref, wk_ref, wv_ref, wo_ref,
                             bo_ref, o_ref, *, heads, dim_head, scale):
    # Blocks:
    #   x: (1, n, dim)   m: (1, nm, dim)
    #   wq/wk/wv: (dim, inner)   wo: (inner, dim)   bo: (1, dim)
    #   o: (1, n, dim)
    x = x_ref[0]                      # (n, dim)
    mm = m_ref[0]                     # (nm, dim)

    # q/k/v projections, kept as (seq, heads*dim_head) slabs (no transposes).
    q = jnp.dot(x, wq_ref[...], preferred_element_type=jnp.float32)    # (n, inner)
    k = jnp.dot(mm, wk_ref[...], preferred_element_type=jnp.float32)   # (nm, inner)
    v = jnp.dot(mm, wv_ref[...], preferred_element_type=jnp.float32)   # (nm, inner)

    wo = wo_ref[...]                  # (inner, dim)
    n = x.shape[0]
    dim = wo.shape[1]

    # out = concat_h( softmax(q_h k_h^T * scale) v_h ) @ wo + bo
    #     = sum_h softmax(q_h k_h^T * scale) v_h @ wo[h*dh:(h+1)*dh, :] + bo
    acc = jnp.zeros((n, dim), jnp.float32)
    for hi in range(heads):           # static unroll; heads is small
        sl = slice(hi * dim_head, (hi + 1) * dim_head)
        qh, kh, vh = q[:, sl], k[:, sl], v[:, sl]
        # Contract the last dims directly -- no explicit k transpose (XLU-free).
        dots = lax.dot_general(qh, kh, (((1,), (1,)), ((), ())),
                               preferred_element_type=jnp.float32) * scale
        dots = dots - jnp.max(dots, axis=-1, keepdims=True)
        e = jnp.exp(dots)
        p = e * pl.reciprocal(jnp.sum(e, axis=-1, keepdims=True), approx=True)
        oh = jnp.dot(p, vh, preferred_element_type=jnp.float32)        # (n, dh)
        acc = acc + jnp.dot(oh, wo[sl, :], preferred_element_type=jnp.float32)

    o_ref[0] = acc + bo_ref[...]


# ----------------------------------------------------------------------------
# Module-equivalent forward (mask=None path)
# ----------------------------------------------------------------------------
def cross_attention_forward(params, x, m, heads, dim_head):
    b, n, dim = x.shape
    _, nm, _ = m.shape
    inner = heads * dim_head
    scale = dim ** (-0.5)             # matches PyTorch: self.scale = dim ** -0.5

    kern = functools.partial(_fused_cross_attn_kernel,
                             heads=heads, dim_head=dim_head, scale=scale)
    bo2d = params["bo"].reshape(1, dim)

    return pl.pallas_call(
        kern,
        out_shape=jax.ShapeDtypeStruct((b, n, dim), jnp.float32),
        grid=(b,),
        in_specs=[
            pl.BlockSpec((1, n, dim), lambda bi: (bi, 0, 0)),    # x
            pl.BlockSpec((1, nm, dim), lambda bi: (bi, 0, 0)),   # m
            pl.BlockSpec((dim, inner), lambda bi: (0, 0)),       # wq (resident)
            pl.BlockSpec((dim, inner), lambda bi: (0, 0)),       # wk (resident)
            pl.BlockSpec((dim, inner), lambda bi: (0, 0)),       # wv (resident)
            pl.BlockSpec((inner, dim), lambda bi: (0, 0)),       # wo (resident)
            pl.BlockSpec((1, dim), lambda bi: (0, 0)),           # bo (resident)
        ],
        out_specs=pl.BlockSpec((1, n, dim), lambda bi: (bi, 0, 0)),
        compiler_params=pltpu.CompilerParams(
            dimension_semantics=("parallel",)),
    )(x, m, params["wq"], params["wk"], params["wv"], params["wo"], bo2d)


# ----------------------------------------------------------------------------
# Parameter init (deterministic, kaiming-uniform-ish bound; weights stored (in, out))
# ----------------------------------------------------------------------------
def init_cross_attention_params(key, dim, heads, dim_head):
    inner_dim = heads * dim_head
    k1, k2, k3, k4, k5 = jax.random.split(key, 5)

    def _lin(k, fan_in, fan_out):
        bound = 1.0 / math.sqrt(fan_in)
        return jax.random.uniform(k, (fan_in, fan_out), jnp.float32, -bound, bound)

    return {
        "wq": _lin(k1, dim, inner_dim),
        "wk": _lin(k2, dim, inner_dim),
        "wv": _lin(k3, dim, inner_dim),
        "wo": _lin(k4, inner_dim, dim),
        "bo": jax.random.uniform(k5, (dim,), jnp.float32,
                                 -1.0 / math.sqrt(inner_dim),
                                 1.0 / math.sqrt(inner_dim)),
    }


# ----------------------------------------------------------------------------
# Pure-JAX reference (mirrors the PyTorch module, mask=None, softmax=True)
# ----------------------------------------------------------------------------
def _reference(params, x, m, heads, dim_head):
    b, n, dim = x.shape
    nm = m.shape[1]
    scale = dim ** (-0.5)
    q = (x.reshape(b * n, dim) @ params["wq"]).reshape(b, n, heads, dim_head)
    k = (m.reshape(b * nm, dim) @ params["wk"]).reshape(b, nm, heads, dim_head)
    v = (m.reshape(b * nm, dim) @ params["wv"]).reshape(b, nm, heads, dim_head)
    q, k, v = (t.transpose(0, 2, 1, 3) for t in (q, k, v))
    dots = jnp.einsum("bhid,bhjd->bhij", q, k) * scale
    attn = jax.nn.softmax(dots, axis=-1)
    out = jnp.einsum("bhij,bhjd->bhid", attn, v)
    out = out.transpose(0, 2, 1, 3).reshape(b * n, heads * dim_head)
    out = out @ params["wo"] + params["bo"]
    return out.reshape(b, n, dim)


if __name__ == "__main__":
    # Small shapes consistent with the module: dim=32, heads=4, dim_head=16
    batch, seq_q, seq_kv, dim = 2, 8, 8, 32
    heads, dim_head = 4, 16

    key = jax.random.PRNGKey(0)
    kx, km, kp = jax.random.split(key, 3)
    x = jax.random.normal(kx, (batch, seq_q, dim), jnp.float32)
    m = jax.random.normal(km, (batch, seq_kv, dim), jnp.float32)
    params = init_cross_attention_params(kp, dim, heads, dim_head)

    out = cross_attention_forward(params, x, m, heads, dim_head)
    out = jax.block_until_ready(out)

    ref = _reference(params, x, m, heads, dim_head)
    assert out.shape == (batch, seq_q, dim)
    # approx=True reciprocal in the softmax denominator -> allow ~1e-3 tolerance
    assert jnp.allclose(out, ref, atol=1e-3, rtol=1e-3), \
        float(jnp.max(jnp.abs(out - ref)))

    print("KERNEL_OK")
</pallas_src>

<mosaic_0001>
module attributes {stable_mosaic.version = 11 : i64} {
  func.func @_fused_cross_attn_kernel(%arg0: i32, %arg1: memref<1x8x32xf32, #tpu.memory_space<vmem>>, %arg2: memref<1x8x32xf32, #tpu.memory_space<vmem>>, %arg3: memref<32x64xf32, #tpu.memory_space<vmem>>, %arg4: memref<32x64xf32, #tpu.memory_space<vmem>>, %arg5: memref<32x64xf32, #tpu.memory_space<vmem>>, %arg6: memref<64x32xf32, #tpu.memory_space<vmem>>, %arg7: memref<1x32xf32, #tpu.memory_space<vmem>>, %arg8: memref<1x8x32xf32, #tpu.memory_space<vmem>>) attributes {dimension_semantics = [#tpu.dimension_semantics<parallel>], iteration_bounds = array<i64: 2>, scalar_prefetch = 0 : i64, scratch_operands = 0 : i64, tpu.core_type = #tpu.core_type<tc>, window_params = [{transform_indices = @transform_0, window_bounds = array<i64: 1, 8, 32>}, {transform_indices = @transform_1, window_bounds = array<i64: 1, 8, 32>}, {pipeline_mode = #tpu.pipeline_mode<synchronous>, transform_indices = @transform_2, window_bounds = array<i64: 32, 64>}, {pipeline_mode = #tpu.pipeline_mode<synchronous>, transform_indices = @transform_3, window_bounds = array<i64: 32, 64>}, {pipeline_mode = #tpu.pipeline_mode<synchronous>, transform_indices = @transform_4, window_bounds = array<i64: 32, 64>}, {pipeline_mode = #tpu.pipeline_mode<synchronous>, transform_indices = @transform_5, window_bounds = array<i64: 64, 32>}, {pipeline_mode = #tpu.pipeline_mode<synchronous>, transform_indices = @transform_6, window_bounds = array<i64: 1, 32>}, {transform_indices = @transform_7, window_bounds = array<i64: 1, 8, 32>}]} {
    %c0 = arith.constant 0 : index
    %c0_0 = arith.constant 0 : index
    %c0_1 = arith.constant 0 : index
    %0 = vector.load %arg1[%c0, %c0_0, %c0_1] : memref<1x8x32xf32, #tpu.memory_space<vmem>>, vector<1x8x32xf32>
    %1 = vector.shape_cast %0 : vector<1x8x32xf32> to vector<8x32xf32>
    %c0_2 = arith.constant 0 : index
    %c0_3 = arith.constant 0 : index
    %c0_4 = arith.constant 0 : index
    %2 = vector.load %arg2[%c0_2, %c0_3, %c0_4] : memref<1x8x32xf32, #tpu.memory_space<vmem>>, vector<1x8x32xf32>
    %3 = vector.shape_cast %2 : vector<1x8x32xf32> to vector<8x32xf32>
    %c0_5 = arith.constant 0 : index
    %c0_6 = arith.constant 0 : index
    %4 = vector.load %arg3[%c0_5, %c0_6] : memref<32x64xf32, #tpu.memory_space<vmem>>, vector<32x64xf32>
    %cst = arith.constant dense<0.000000e+00> : vector<8x64xf32>
    %5 = tpu.matmul %1, %4, %cst {dimension_numbers = #tpu.dot_dimension_numbers<[1], [0], [0], [1], [0, 0, 1, 1], [], []>} : vector<8x32xf32>, vector<32x64xf32>, vector<8x64xf32> -> vector<8x64xf32>
    %c0_7 = arith.constant 0 : index
    %c0_8 = arith.constant 0 : index
    %6 = vector.load %arg4[%c0_7, %c0_8] : memref<32x64xf32, #tpu.memory_space<vmem>>, vector<32x64xf32>
    %cst_9 = arith.constant dense<0.000000e+00> : vector<8x64xf32>
    %7 = tpu.matmul %3, %6, %cst_9 {dimension_numbers = #tpu.dot_dimension_numbers<[1], [0], [0], [1], [0, 0, 1, 1], [], []>} : vector<8x32xf32>, vector<32x64xf32>, vector<8x64xf32> -> vector<8x64xf32>
    %c0_10 = arith.constant 0 : index
    %c0_11 = arith.constant 0 : index
    %8 = vector.load %arg5[%c0_10, %c0_11] : memref<32x64xf32, #tpu.memory_space<vmem>>, vector<32x64xf32>
    %cst_12 = arith.constant dense<0.000000e+00> : vector<8x64xf32>
    %9 = tpu.matmul %3, %8, %cst_12 {dimension_numbers = #tpu.dot_dimension_numbers<[1], [0], [0], [1], [0, 0, 1, 1], [], []>} : vector<8x32xf32>, vector<32x64xf32>, vector<8x64xf32> -> vector<8x64xf32>
    %c0_13 = arith.constant 0 : index
    %c0_14 = arith.constant 0 : index
    %10 = vector.load %arg6[%c0_13, %c0_14] : memref<64x32xf32, #tpu.memory_space<vmem>>, vector<64x32xf32>
    %cst_15 = arith.constant 0.000000e+00 : f32
    %11 = vector.broadcast %cst_15 : f32 to vector<8x32xf32>
    %12 = vector.extract_strided_slice %5 {offsets = [0, 0], sizes = [8, 16], strides = [1, 1]} : vector<8x64xf32> to vector<8x16xf32>
    %13 = vector.extract_strided_slice %7 {offsets = [0, 0], sizes = [8, 16], strides = [1, 1]} : vector<8x64xf32> to vector<8x16xf32>
    %14 = vector.extract_strided_slice %9 {offsets = [0, 0], sizes = [8, 16], strides = [1, 1]} : vector<8x64xf32> to vector<8x16xf32>
    %cst_16 = arith.constant dense<0.000000e+00> : vector<8x8xf32>
    %15 = tpu.matmul %12, %13, %cst_16 {dimension_numbers = #tpu.dot_dimension_numbers<[1], [1], [0], [0], [0, 0, 1, 0], [], []>} : vector<8x16xf32>, vector<8x16xf32>, vector<8x8xf32> -> vector<8x8xf32>
    %cst_17 = arith.constant 0.176776692 : f32
    %16 = vector.broadcast %cst_17 : f32 to vector<8x8xf32>
    %17 = arith.mulf %15, %16 : vector<8x8xf32>
    %cst_18 = arith.constant dense<0xFF800000> : vector<8xf32>
    %18 = vector.multi_reduction <maximumf>, %17, %cst_18 [1] : vector<8x8xf32> to vector<8xf32>
    %19 = vector.shape_cast %18 : vector<8xf32> to vector<8x1xf32>
    %20 = vector.broadcast %19 : vector<8x1xf32> to vector<8x8xf32>
    %21 = arith.subf %17, %20 : vector<8x8xf32>
    %22 = math.exp %21 : vector<8x8xf32>
    %cst_19 = arith.constant dense<0.000000e+00> : vector<8xf32>
    %23 = vector.multi_reduction <add>, %22, %cst_19 [1] : vector<8x8xf32> to vector<8xf32>
    %24 = vector.shape_cast %23 : vector<8xf32> to vector<8x1xf32>
    %25 = tpu.reciprocal %24 {approx = true} : vector<8x1xf32> -> vector<8x1xf32>
    %26 = vector.broadcast %25 : vector<8x1xf32> to vector<8x8xf32>
    %27 = arith.mulf %22, %26 : vector<8x8xf32>
    %cst_20 = arith.constant dense<0.000000e+00> : vector<8x16xf32>
    %28 = tpu.matmul %27, %14, %cst_20 {dimension_numbers = #tpu.dot_dimension_numbers<[1], [0], [0], [1], [0, 0, 1, 1], [], []>} : vector<8x8xf32>, vector<8x16xf32>, vector<8x16xf32> -> vector<8x16xf32>
    %29 = vector.extract_strided_slice %10 {offsets = [0, 0], sizes = [16, 32], strides = [1, 1]} : vector<64x32xf32> to vector<16x32xf32>
    %cst_21 = arith.constant dense<0.000000e+00> : vector<8x32xf32>
    %30 = tpu.matmul %28, %29, %cst_21 {dimension_numbers = #tpu.dot_dimension_numbers<[1], [0], [0], [1], [0, 0, 1, 1], [], []>} : vector<8x16xf32>, vector<16x32xf32>, vector<8x32xf32> -> vector<8x32xf32>
    %31 = arith.addf %11, %30 : vector<8x32xf32>
    %32 = vector.extract_strided_slice %5 {offsets = [0, 16], sizes = [8, 16], strides = [1, 1]} : vector<8x64xf32> to vector<8x16xf32>
    %33 = vector.extract_strided_slice %7 {offsets = [0, 16], sizes = [8, 16], strides = [1, 1]} : vector<8x64xf32> to vector<8x16xf32>
    %34 = vector.extract_strided_slice %9 {offsets = [0, 16], sizes = [8, 16], strides = [1, 1]} : vector<8x64xf32> to vector<8x16xf32>
    %cst_22 = arith.constant dense<0.000000e+00> : vector<8x8xf32>
    %35 = tpu.matmul %32, %33, %cst_22 {dimension_numbers = #tpu.dot_dimension_numbers<[1], [1], [0], [0], [0, 0, 1, 0], [], []>} : vector<8x16xf32>, vector<8x16xf32>, vector<8x8xf32> -> vector<8x8xf32>
    %cst_23 = arith.constant 0.176776692 : f32
    %36 = vector.broadcast %cst_23 : f32 to vector<8x8xf32>
    %37 = arith.mulf %35, %36 : vector<8x8xf32>
    %cst_24 = arith.constant dense<0xFF800000> : vector<8xf32>
    %38 = vector.multi_reduction <maximumf>, %37, %cst_24 [1] : vector<8x8xf32> to vector<8xf32>
    %39 = vector.shape_cast %38 : vector<8xf32> to vector<8x1xf32>
    %40 = vector.broadcast %39 : vector<8x1xf32> to vector<8x8xf32>
    %41 = arith.subf %37, %40 : vector<8x8xf32>
    %42 = math.exp %41 : vector<8x8xf32>
    %cst_25 = arith.constant dense<0.000000e+00> : vector<8xf32>
    %43 = vector.multi_reduction <add>, %42, %cst_25 [1] : vector<8x8xf32> to vector<8xf32>
    %44 = vector.shape_cast %43 : vector<8xf32> to vector<8x1xf32>
    %45 = tpu.reciprocal %44 {approx = true} : vector<8x1xf32> -> vector<8x1xf32>
    %46 = vector.broadcast %45 : vector<8x1xf32> to vector<8x8xf32>
    %47 = arith.mulf %42, %46 : vector<8x8xf32>
    %cst_26 = arith.constant dense<0.000000e+00> : vector<8x16xf32>
    %48 = tpu.matmul %47, %34, %cst_26 {dimension_numbers = #tpu.dot_dimension_numbers<[1], [0], [0], [1], [0, 0, 1, 1], [], []>} : vector<8x8xf32>, vector<8x16xf32>, vector<8x16xf32> -> vector<8x16xf32>
    %49 = vector.extract_strided_slice %10 {offsets = [16, 0], sizes = [16, 32], strides = [1, 1]} : vector<64x32xf32> to vector<16x32xf32>
    %cst_27 = arith.constant dense<0.000000e+00> : vector<8x32xf32>
    %50 = tpu.matmul %48, %49, %cst_27 {dimension_numbers = #tpu.dot_dimension_numbers<[1], [0], [0], [1], [0, 0, 1, 1], [], []>} : vector<8x16xf32>, vector<16x32xf32>, vector<8x32xf32> -> vector<8x32xf32>
    %51 = arith.addf %31, %50 : vector<8x32xf32>
    %52 = vector.extract_strided_slice %5 {offsets = [0, 32], sizes = [8, 16], strides = [1, 1]} : vector<8x64xf32> to vector<8x16xf32>
    %53 = vector.extract_strided_slice %7 {offsets = [0, 32], sizes = [8, 16], strides = [1, 1]} : vector<8x64xf32> to vector<8x16xf32>
    %54 = vector.extract_strided_slice %9 {offsets = [0, 32], sizes = [8, 16], strides = [1, 1]} : vector<8x64xf32> to vector<8x16xf32>
    %cst_28 = arith.constant dense<0.000000e+00> : vector<8x8xf32>
    %55 = tpu.matmul %52, %53, %cst_28 {dimension_numbers = #tpu.dot_dimension_numbers<[1], [1], [0], [0], [0, 0, 1, 0], [], []>} : vector<8x16xf32>, vector<8x16xf32>, vector<8x8xf32> -> vector<8x8xf32>
    %cst_29 = arith.constant 0.176776692 : f32
    %56 = vector.broadcast %cst_29 : f32 to vector<8x8xf32>
    %57 = arith.mulf %55, %56 : vector<8x8xf32>
    %cst_30 = arith.constant dense<0xFF800000> : vector<8xf32>
    %58 = vector.multi_reduction <maximumf>, %57, %cst_30 [1] : vector<8x8xf32> to vector<8xf32>
    %59 = vector.shape_cast %58 : vector<8xf32> to vector<8x1xf32>
    %60 = vector.broadcast %59 : vector<8x1xf32> to vector<8x8xf32>
    %61 = arith.subf %57, %60 : vector<8x8xf32>
    %62 = math.exp %61 : vector<8x8xf32>
    %cst_31 = arith.constant dense<0.000000e+00> : vector<8xf32>
    %63 = vector.multi_reduction <add>, %62, %cst_31 [1] : vector<8x8xf32> to vector<8xf32>
    %64 = vector.shape_cast %63 : vector<8xf32> to vector<8x1xf32>
    %65 = tpu.reciprocal %64 {approx = true} : vector<8x1xf32> -> vector<8x1xf32>
    %66 = vector.broadcast %65 : vector<8x1xf32> to vector<8x8xf32>
    %67 = arith.mulf %62, %66 : vector<8x8xf32>
    %cst_32 = arith.constant dense<0.000000e+00> : vector<8x16xf32>
    %68 = tpu.matmul %67, %54, %cst_32 {dimension_numbers = #tpu.dot_dimension_numbers<[1], [0], [0], [1], [0, 0, 1, 1], [], []>} : vector<8x8xf32>, vector<8x16xf32>, vector<8x16xf32> -> vector<8x16xf32>
    %69 = vector.extract_strided_slice %10 {offsets = [32, 0], sizes = [16, 32], strides = [1, 1]} : vector<64x32xf32> to vector<16x32xf32>
    %cst_33 = arith.constant dense<0.000000e+00> : vector<8x32xf32>
    %70 = tpu.matmul %68, %69, %cst_33 {dimension_numbers = #tpu.dot_dimension_numbers<[1], [0], [0], [1], [0, 0, 1, 1], [], []>} : vector<8x16xf32>, vector<16x32xf32>, vector<8x32xf32> -> vector<8x32xf32>
    %71 = arith.addf %51, %70 : vector<8x32xf32>
    %72 = vector.extract_strided_slice %5 {offsets = [0, 48], sizes = [8, 16], strides = [1, 1]} : vector<8x64xf32> to vector<8x16xf32>
    %73 = vector.extract_strided_slice %7 {offsets = [0, 48], sizes = [8, 16], strides = [1, 1]} : vector<8x64xf32> to vector<8x16xf32>
    %74 = vector.extract_strided_slice %9 {offsets = [0, 48], sizes = [8, 16], strides = [1, 1]} : vector<8x64xf32> to vector<8x16xf32>
    %cst_34 = arith.constant dense<0.000000e+00> : vector<8x8xf32>
    %75 = tpu.matmul %72, %73, %cst_34 {dimension_numbers = #tpu.dot_dimension_numbers<[1], [1], [0], [0], [0, 0, 1, 0], [], []>} : vector<8x16xf32>, vector<8x16xf32>, vector<8x8xf32> -> vector<8x8xf32>
    %cst_35 = arith.constant 0.176776692 : f32
    %76 = vector.broadcast %cst_35 : f32 to vector<8x8xf32>
    %77 = arith.mulf %75, %76 : vector<8x8xf32>
    %cst_36 = arith.constant dense<0xFF800000> : vector<8xf32>
    %78 = vector.multi_reduction <maximumf>, %77, %cst_36 [1] : vector<8x8xf32> to vector<8xf32>
    %79 = vector.shape_cast %78 : vector<8xf32> to vector<8x1xf32>
    %80 = vector.broadcast %79 : vector<8x1xf32> to vector<8x8xf32>
    %81 = arith.subf %77, %80 : vector<8x8xf32>
    %82 = math.exp %81 : vector<8x8xf32>
    %cst_37 = arith.constant dense<0.000000e+00> : vector<8xf32>
    %83 = vector.multi_reduction <add>, %82, %cst_37 [1] : vector<8x8xf32> to vector<8xf32>
    %84 = vector.shape_cast %83 : vector<8xf32> to vector<8x1xf32>
    %85 = tpu.reciprocal %84 {approx = true} : vector<8x1xf32> -> vector<8x1xf32>
    %86 = vector.broadcast %85 : vector<8x1xf32> to vector<8x8xf32>
    %87 = arith.mulf %82, %86 : vector<8x8xf32>
    %cst_38 = arith.constant dense<0.000000e+00> : vector<8x16xf32>
    %88 = tpu.matmul %87, %74, %cst_38 {dimension_numbers = #tpu.dot_dimension_numbers<[1], [0], [0], [1], [0, 0, 1, 1], [], []>} : vector<8x8xf32>, vector<8x16xf32>, vector<8x16xf32> -> vector<8x16xf32>
    %89 = vector.extract_strided_slice %10 {offsets = [48, 0], sizes = [16, 32], strides = [1, 1]} : vector<64x32xf32> to vector<16x32xf32>
    %cst_39 = arith.constant dense<0.000000e+00> : vector<8x32xf32>
    %90 = tpu.matmul %88, %89, %cst_39 {dimension_numbers = #tpu.dot_dimension_numbers<[1], [0], [0], [1], [0, 0, 1, 1], [], []>} : vector<8x16xf32>, vector<16x32xf32>, vector<8x32xf32> -> vector<8x32xf32>
    %91 = arith.addf %71, %90 : vector<8x32xf32>
    %c0_40 = arith.constant 0 : index
    %c0_41 = arith.constant 0 : index
    %92 = vector.load %arg7[%c0_40, %c0_41] : memref<1x32xf32, #tpu.memory_space<vmem>>, vector<1x32xf32>
    %93 = vector.broadcast %92 : vector<1x32xf32> to vector<8x32xf32>
    %94 = arith.addf %91, %93 : vector<8x32xf32>
    %c0_42 = arith.constant 0 : index
    %c0_43 = arith.constant 0 : index
    %c0_44 = arith.constant 0 : index
    %95 = vector.load %arg8[%c0_42, %c0_43, %c0_44] : memref<1x8x32xf32, #tpu.memory_space<vmem>>, vector<1x8x32xf32>
    %96 = vector.shape_cast %95 : vector<1x8x32xf32> to vector<8x32xf32>
    %97 = vector.shape_cast %94 : vector<8x32xf32> to vector<1x8x32xf32>
    tpu.vector_store %arg8[%c0_42, %c0_43, %c0_44], %97 {strides = array<i32>} : memref<1x8x32xf32, #tpu.memory_space<vmem>>, vector<1x8x32xf32>,
    return
  }
  func.func @transform_0(%arg0: i32) -> (i32, i32, i32) {
    %c0_i32 = arith.constant 0 : i32
    %c0_i32_0 = arith.constant 0 : i32
    %c0_i32_1 = arith.constant 0 : i32
    return %arg0, %c0_i32, %c0_i32_0 : i32, i32, i32
  }
  func.func @transform_1(%arg0: i32) -> (i32, i32, i32) {
    %c0_i32 = arith.constant 0 : i32
    %c0_i32_0 = arith.constant 0 : i32
    %c0_i32_1 = arith.constant 0 : i32
    return %arg0, %c0_i32, %c0_i32_0 : i32, i32, i32
  }
  func.func @transform_2(%arg0: i32) -> (i32, i32) {
    %c0_i32 = arith.constant 0 : i32
    %c0_i32_0 = arith.constant 0 : i32
    %c0_i32_1 = arith.constant 0 : i32
    return %c0_i32, %c0_i32_0 : i32, i32
  }
  func.func @transform_3(%arg0: i32) -> (i32, i32) {
    %c0_i32 = arith.constant 0 : i32
    %c0_i32_0 = arith.constant 0 : i32
    %c0_i32_1 = arith.constant 0 : i32
    return %c0_i32, %c0_i32_0 : i32, i32
  }
  func.func @transform_4(%arg0: i32) -> (i32, i32) {
    %c0_i32 = arith.constant 0 : i32
    %c0_i32_0 = arith.constant 0 : i32
    %c0_i32_1 = arith.constant 0 : i32
    return %c0_i32, %c0_i32_0 : i32, i32
  }
  func.func @transform_5(%arg0: i32) -> (i32, i32) {
    %c0_i32 = arith.constant 0 : i32
    %c0_i32_0 = arith.constant 0 : i32
    %c0_i32_1 = arith.constant 0 : i32
    return %c0_i32, %c0_i32_0 : i32, i32
  }
  func.func @transform_6(%arg0: i32) -> (i32, i32) {
    %c0_i32 = arith.constant 0 : i32
    %c0_i32_0 = arith.constant 0 : i32
    %c0_i32_1 = arith.constant 0 : i32
    return %c0_i32, %c0_i32_0 : i32, i32
  }
  func.func @transform_7(%arg0: i32) -> (i32, i32, i32) {
    %c0_i32 = arith.constant 0 : i32
    %c0_i32_0 = arith.constant 0 : i32
    %c0_i32_1 = arith.constant 0 : i32
    return %arg0, %c0_i32, %c0_i32_0 : i32, i32, i32
  }
}

</mosaic_0001>

<llo_original>
// kernel: tpu_custom_call.1
$region0: #{tpu_custom_call.1}
  #allocation0 [shape = 'u32[]', space=smem, size = 0x4, offset = 0x4, fixed_abs, tag = 'smem constant byte address 0x4 - core index']
  #allocation1 [shape = 'u32[144,128]{1,0:T(1,128)}', space=vmem, size = 0x12000, scoped, tag = 'internal scratch']
  %s0 = inlined_call_operand.hbm [shape: f32[2,8,32], index: 0, kind: input, shape index: {}]
  %s1 = inlined_call_operand.hbm [shape: f32[2,8,32], index: 1, kind: input, shape index: {}]
  %s2 = inlined_call_operand.vmem [shape: f32[32,64], index: 2, kind: input, shape index: {}]
  %s3 = inlined_call_operand.vmem [shape: f32[32,64], index: 3, kind: input, shape index: {}]
  %s4 = inlined_call_operand.vmem [shape: f32[32,64], index: 4, kind: input, shape index: {}]
  %s5 = inlined_call_operand.vmem [shape: f32[64,32], index: 5, kind: input, shape index: {}]
  %s6 = inlined_call_operand.vmem [shape: f32[1,32], index: 6, kind: input, shape index: {}]
  %s7 = inlined_call_operand.hbm [shape: f32[2,8,32], index: 7, kind: output, shape index: {}]
  %s8 = sld [smem:[#allocation0]]
  $region69: #{tpu_custom_call.1} parent=0
    _
  %s10 = ssub.s32 1, %s8
  %s11 = scalar_select 0, %s10, %s8
  $region1: #{tpu_custom_call.1} parent=0
    #allocation2 [shape = 'u8[8192]{0}', space=vmem, size = 0x2000, scoped, tag = 'input window, operand 0']
    #allocation3 [shape = 's32[2]{0}', space=sflag, size = 0x8, scoped, tag = 'scoped memory for tpu_custom_call.1']
    #allocation4 [shape = 's32[2]{0}', space=sflag, size = 0x8, scoped, tag = 'scoped memory for tpu_custom_call.1']
    #allocation5 [shape = 'u8[8192]{0}', space=vmem, size = 0x2000, scoped, tag = 'input window, operand 1']
    #allocation6 [shape = 's32[2]{0}', space=sflag, size = 0x8, scoped, tag = 'scoped memory for tpu_custom_call.1']
    #allocation7 [shape = 'u8[8192]{0}', space=vmem, size = 0x2000, scoped, tag = 'output window, operand 0']
    %12 = vsyncpa [#allocation3], 0
    %s13 = scalar_lea.sflag [#allocation3], 1
    %14 = vsyncpa %s13, 0
    %15 = vsyncpa [#allocation6], 0
    %s16 = scalar_lea.sflag [#allocation6], 1
    %17 = vsyncpa %s16, 0
    %18 = vsyncpa [#allocation4], 0
    %s19 = scalar_lea.sflag [#allocation4], 1
    %20 = vsyncpa %s19, 0
    loop: start=0, step=1, limit=4
    $region2: #{tpu_custom_call.1} parent=1 // loop_pre_header
      _
    $region3: #{tpu_custom_call.1} parent=1 // loop_header
      %s22 = sphi 0, %s26
      %p23 = scmp.ge.s32.totalorder %s22, 4
      %s32 = sphi 0, %s34
      %s35 = sphi 0, %s32
      %s36 = sphi 0, %s35
      %s52 = sphi 0, %s36
      %s58 = sphi 0, %s60
      %s61 = sphi 0, %s58
      %s62 = sphi 0, %s61
      %s78 = sphi 0, %s62
      %s82 = sphi 0, %s82
      %s84 = sphi 0, %s82
      %s85 = sphi 0, %s84
      %s99 = sphi 0, %s85
      %s103 = sphi 0, %s103
      %s105 = sphi 0, %s103
      %s106 = sphi 0, %s105
      %s120 = sphi 0, %s106
      %s124 = sphi 0, %s124
      %s126 = sphi 0, %s124
      %s127 = sphi 0, %s126
      %s141 = sphi 0, %s127
      %s145 = sphi 0, %s145
      %s147 = sphi 0, %s145
      %s148 = sphi 0, %s147
      %s162 = sphi 0, %s148
      %s166 = sphi 0, %s166
      %s168 = sphi 0, %s166
      %s169 = sphi 0, %s168
      %s183 = sphi 0, %s169
      %s189 = sphi 0, %s191
      %s192 = sphi 0, %s189
      %s193 = sphi 0, %s192
      %s209 = sphi 0, %s193
    $region4: #{tpu_custom_call.1} parent=1 // loop_header_branch
      %25 = sbr.rel (%p23) target = $region8
    $region5: #{tpu_custom_call.1} parent=1 // loop_body
      %s27 = ssub.s32 %s22, 1
      %s28 = ssub.s32 %s22, 2
      %s29 = sadd.s32 %s22, 1
      %s30 = ssub.s32 %s22, %s29
      %p31 = scmp.eq.s32.totalorder %s30, 0
      %s33 = sadd.s32 %s32, 1
      %s34 = scalar_select %p31, %s32, %s33
      %p37 = pneg %p31
      %p38 = scmp.eq.s32.totalorder %s22, 1
      %p39 = por %p37, %p38
      %p40 = scmp.ne.s32.totalorder %s32, %s35
      %p41 = scmp.eq.s32.totalorder %s22, 0
      %p42 = por %p40, %p41
      %p43 = scmp.ne.s32.totalorder %s32, %s35
      %p44 = scmp.eq.s32.totalorder %s27, 1
      %p45 = por %p43, %p44
      %p46 = scmp.ne.s32.totalorder %s35, %s36
      %p47 = scmp.eq.s32.totalorder %s27, 0
      %p48 = por %p46, %p47
      %p49 = scmp.ne.s32.totalorder %s35, %s36
      %p50 = scmp.eq.s32.totalorder %s28, 1
      %p51 = por %p49, %p50
      %p53 = scmp.ne.s32.totalorder %s36, %s52
      %p54 = scmp.eq.s32.totalorder %s28, 0
      %p55 = por %p53, %p54
      %s56 = ssub.s32 %s22, %s29
      %p57 = scmp.eq.s32.totalorder %s56, 0
      %s59 = sadd.s32 %s58, 1
      %s60 = scalar_select %p57, %s58, %s59
      %p63 = pneg %p57
      %p64 = scmp.eq.s32.totalorder %s22, 1
      %p65 = por %p63, %p64
      %p66 = scmp.ne.s32.totalorder %s58, %s61
      %p67 = scmp.eq.s32.totalorder %s22, 0
      %p68 = por %p66, %p67
      %p69 = scmp.ne.s32.totalorder %s58, %s61
      %p70 = scmp.eq.s32.totalorder %s27, 1
      %p71 = por %p69, %p70
      %p72 = scmp.ne.s32.totalorder %s61, %s62
      %p73 = scmp.eq.s32.totalorder %s27, 0
      %p74 = por %p72, %p73
      %p75 = scmp.ne.s32.totalorder %s61, %s62
      %p76 = scmp.eq.s32.totalorder %s28, 1
      %p77 = por %p75, %p76
      %p79 = scmp.ne.s32.totalorder %s62, %s78
      %p80 = scmp.eq.s32.totalorder %s28, 0
      %p81 = por %p79, %p80
      %s83 = sadd.s32 %s82, 1
      %p86 = scmp.eq.s32.totalorder %s22, 1
      %p87 = scmp.ne.s32.totalorder %s82, %s84
      %p88 = scmp.eq.s32.totalorder %s22, 0
      %p89 = por %p87, %p88
      %p90 = scmp.ne.s32.totalorder %s82, %s84
      %p91 = scmp.eq.s32.totalorder %s27, 1
      %p92 = por %p90, %p91
      %p93 = scmp.ne.s32.totalorder %s84, %s85
      %p94 = scmp.eq.s32.totalorder %s27, 0
      %p95 = por %p93, %p94
      %p96 = scmp.ne.s32.totalorder %s84, %s85
      %p97 = scmp.eq.s32.totalorder %s28, 1
      %p98 = por %p96, %p97
      %p100 = scmp.ne.s32.totalorder %s85, %s99
      %p101 = scmp.eq.s32.totalorder %s28, 0
      %p102 = por %p100, %p101
      %s104 = sadd.s32 %s103, 1
      %p107 = scmp.eq.s32.totalorder %s22, 1
      %p108 = scmp.ne.s32.totalorder %s103, %s105
      %p109 = scmp.eq.s32.totalorder %s22, 0
      %p110 = por %p108, %p109
      %p111 = scmp.ne.s32.totalorder %s103, %s105
      %p112 = scmp.eq.s32.totalorder %s27, 1
      %p113 = por %p111, %p112
      %p114 = scmp.ne.s32.totalorder %s105, %s106
      %p115 = scmp.eq.s32.totalorder %s27, 0
      %p116 = por %p114, %p115
      %p117 = scmp.ne.s32.totalorder %s105, %s106
      %p118 = scmp.eq.s32.totalorder %s28, 1
      %p119 = por %p117, %p118
      %p121 = scmp.ne.s32.totalorder %s106, %s120
      %p122 = scmp.eq.s32.totalorder %s28, 0
      %p123 = por %p121, %p122
      %s125 = sadd.s32 %s124, 1
      %p128 = scmp.eq.s32.totalorder %s22, 1
      %p129 = scmp.ne.s32.totalorder %s124, %s126
      %p130 = scmp.eq.s32.totalorder %s22, 0
      %p131 = por %p129, %p130
      %p132 = scmp.ne.s32.totalorder %s124, %s126
      %p133 = scmp.eq.s32.totalorder %s27, 1
      %p134 = por %p132, %p133
      %p135 = scmp.ne.s32.totalorder %s126, %s127
      %p136 = scmp.eq.s32.totalorder %s27, 0
      %p137 = por %p135, %p136
      %p138 = scmp.ne.s32.totalorder %s126, %s127
      %p139 = scmp.eq.s32.totalorder %s28, 1
      %p140 = por %p138, %p139
      %p142 = scmp.ne.s32.totalorder %s127, %s141
      %p143 = scmp.eq.s32.totalorder %s28, 0
      %p144 = por %p142, %p143
      %s146 = sadd.s32 %s145, 1
      %p149 = scmp.eq.s32.totalorder %s22, 1
      %p150 = scmp.ne.s32.totalorder %s145, %s147
      %p151 = scmp.eq.s32.totalorder %s22, 0
      %p152 = por %p150, %p151
      %p153 = scmp.ne.s32.totalorder %s145, %s147
      %p154 = scmp.eq.s32.totalorder %s27, 1
      %p155 = por %p153, %p154
      %p156 = scmp.ne.s32.totalorder %s147, %s148
      %p157 = scmp.eq.s32.totalorder %s27, 0
      %p158 = por %p156, %p157
      %p159 = scmp.ne.s32.totalorder %s147, %s148
      %p160 = scmp.eq.s32.totalorder %s28, 1
      %p161 = por %p159, %p160
      %p163 = scmp.ne.s32.totalorder %s148, %s162
      %p164 = scmp.eq.s32.totalorder %s28, 0
      %p165 = por %p163, %p164
      %s167 = sadd.s32 %s166, 1
      %p170 = scmp.eq.s32.totalorder %s22, 1
      %p171 = scmp.ne.s32.totalorder %s166, %s168
      %p172 = scmp.eq.s32.totalorder %s22, 0
      %p173 = por %p171, %p172
      %p174 = scmp.ne.s32.totalorder %s166, %s168
      %p175 = scmp.eq.s32.totalorder %s27, 1
      %p176 = por %p174, %p175
      %p177 = scmp.ne.s32.totalorder %s168, %s169
      %p178 = scmp.eq.s32.totalorder %s27, 0
      %p179 = por %p177, %p178
      %p180 = scmp.ne.s32.totalorder %s168, %s169
      %p181 = scmp.eq.s32.totalorder %s28, 1
      %p182 = por %p180, %p181
      %p184 = scmp.ne.s32.totalorder %s169, %s183
      %p185 = scmp.eq.s32.totalorder %s28, 0
      %p186 = por %p184, %p185
      %s187 = ssub.s32 %s22, %s29
      %p188 = scmp.eq.s32.totalorder %s187, 0
      %s190 = sadd.s32 %s189, 1
      %s191 = scalar_select %p188, %s189, %s190
      %p194 = pneg %p188
      %p195 = scmp.eq.s32.totalorder %s22, 1
      %p196 = por %p194, %p195
      %p197 = scmp.ne.s32.totalorder %s189, %s192
      %p198 = scmp.eq.s32.totalorder %s22, 0
      %p199 = por %p197, %p198
      %p200 = scmp.ne.s32.totalorder %s189, %s192
      %p201 = scmp.eq.s32.totalorder %s27, 1
      %p202 = por %p200, %p201
      %p203 = scmp.ne.s32.totalorder %s192, %s193
      %p204 = scmp.eq.s32.totalorder %s27, 0
      %p205 = por %p203, %p204
      %p206 = scmp.ne.s32.totalorder %s192, %s193
      %p207 = scmp.eq.s32.totalorder %s28, 1
      %p208 = por %p206, %p207
      %p210 = scmp.ne.s32.totalorder %s193, %s209
      %p211 = scmp.eq.s32.totalorder %s28, 0
      %p212 = por %p210, %p211
      %p213 = scmp.le.s32.totalorder 1, %s22
      %p214 = scmp.lt.s32.totalorder %s22, 3
      %p215 = pnand %p213, %p214
      %p216 = pneg %p215
      // Predicated region
      $region9: #{tpu_custom_call.1} parent=5 // pred_check
        _
      $region10: #{tpu_custom_call.1} parent=5 // pred_check_branch
        %218 = sbr.rel (%p215) target = $region12
      $region11: #{tpu_custom_call.1} parent=5 // pred_region
        %s219 = ssub.s32 %s22, 1
        // Predicated region
        $region13: #{tpu_custom_call.1} parent=11 // pred_check
          %p220 = pneg %p95
        $region14: #{tpu_custom_call.1} parent=11 // pred_check_branch
          %222 = sbr.rel (%p220) target = $region16
        $region15: #{tpu_custom_call.1} parent=11 // pred_region
          _
        $region16: #{tpu_custom_call.1} parent=11 // pred_fallthru
          _
        // Predicated region
        $region17: #{tpu_custom_call.1} parent=11 // pred_check
          %p223 = pneg %p116
        $region18: #{tpu_custom_call.1} parent=11 // pred_check_branch
          %225 = sbr.rel (%p223) target = $region20
        $region19: #{tpu_custom_call.1} parent=11 // pred_region
          _
        $region20: #{tpu_custom_call.1} parent=11 // pred_fallthru
          _
        // Predicated region
        $region21: #{tpu_custom_call.1} parent=11 // pred_check
          %p226 = pneg %p137
        $region22: #{tpu_custom_call.1} parent=11 // pred_check_branch
          %228 = sbr.rel (%p226) target = $region24
        $region23: #{tpu_custom_call.1} parent=11 // pred_region
          _
        $region24: #{tpu_custom_call.1} parent=11 // pred_fallthru
          _
        // Predicated region
        $region25: #{tpu_custom_call.1} parent=11 // pred_check
          %p229 = pneg %p158
        $region26: #{tpu_custom_call.1} parent=11 // pred_check_branch
          %231 = sbr.rel (%p229) target = $region28
        $region27: #{tpu_custom_call.1} parent=11 // pred_region
          _
        $region28: #{tpu_custom_call.1} parent=11 // pred_fallthru
          _
        // Predicated region
        $region29: #{tpu_custom_call.1} parent=11 // pred_check
          %p232 = pneg %p179
        $region30: #{tpu_custom_call.1} parent=11 // pred_check_branch
          %234 = sbr.rel (%p232) target = $region32
        $region31: #{tpu_custom_call.1} parent=11 // pred_region
          _
        $region32: #{tpu_custom_call.1} parent=11 // pred_fallthru
          _
      $region12: #{tpu_custom_call.1} parent=5 // pred_fallthru
        _
      %p235 = scmp.lt.s32.totalorder %s22, 2
      // Predicated region
      $region33: #{tpu_custom_call.1} parent=5 // pred_check
        %p236 = pneg %p235
      $region34: #{tpu_custom_call.1} parent=5 // pred_check_branch
        %238 = sbr.rel (%p236) target = $region36
      $region35: #{tpu_custom_call.1} parent=5 // pred_region
        // Predicated region
        $region37: #{tpu_custom_call.1} parent=35 // pred_check
          %p239 = pneg %p42
        $region38: #{tpu_custom_call.1} parent=35 // pred_check_branch
          %241 = sbr.rel (%p239) target = $region40
        $region39: #{tpu_custom_call.1} parent=35 // pred_region
          %s242 = sand.u32 %s32, 1
          %s243 = scalar_lea.sflag [#allocation3], %s242
          %s244 = sand.u32 %s32, 1
          %s245 = smul.addr %s244, 8
          %s246 = scalar_lea.vmem [#allocation2], %s245
          %s248 = ssub.s32 128, 128
          %249 = vsyncadd %s243, %s248
          %s250 = smul.addr %s22, 128
          %s251 = scalar_lea.hbm %s0, %s250
          %s253 = sshll.u32 %s246, 4
          %s254 = int_to_ptr.vmem [resolvable:$true] %s253
          %256 = dma.hbm_to_vmem [thread:$0]  %s251, 128, %s254, %s243
        $region40: #{tpu_custom_call.1} parent=35 // pred_fallthru
          _
        // Predicated region
        $region41: #{tpu_custom_call.1} parent=35 // pred_check
          %p257 = pneg %p68
        $region42: #{tpu_custom_call.1} parent=35 // pred_check_branch
          %259 = sbr.rel (%p257) target = $region44
        $region43: #{tpu_custom_call.1} parent=35 // pred_region
          %s260 = sand.u32 %s58, 1
          %s261 = scalar_lea.sflag [#allocation6], %s260
          %s262 = sand.u32 %s58, 1
          %s263 = smul.addr %s262, 8
          %s264 = scalar_lea.vmem [#allocation5], %s263
          %s266 = ssub.s32 128, 128
          %267 = vsyncadd %s261, %s266
          %s268 = smul.addr %s22, 128
          %s269 = scalar_lea.hbm %s1, %s268
          %s271 = sshll.u32 %s264, 4
          %s272 = int_to_ptr.vmem [resolvable:$true] %s271
          %274 = dma.hbm_to_vmem [thread:$0]  %s269, 128, %s272, %s261
        $region44: #{tpu_custom_call.1} parent=35 // pred_fallthru
          _
      $region36: #{tpu_custom_call.1} parent=5 // pred_fallthru
        _
      %p275 = scmp.le.s32.totalorder 1, %s22
      %p276 = scmp.lt.s32.totalorder %s22, 3
      %p277 = pnand %p275, %p276
      %p278 = pneg %p277
      // Predicated region
      $region45: #{tpu_custom_call.1} parent=5 // pred_check
        _
      $region46: #{tpu_custom_call.1} parent=5 // pred_check_branch
        %280 = sbr.rel (%p277) target = $region48
      $region47: #{tpu_custom_call.1} parent=5 // pred_region
        %s281 = ssub.s32 %s22, 1
        %s282 = sand.u32 %s35, 1
        %s283 = scalar_lea.sflag [#allocation3], %s282
        %s284 = sand.u32 %s35, 1
        %s285 = smul.addr %s284, 8
        %s286 = scalar_lea.vmem [#allocation2], %s285
        // Predicated region
        $region49: #{tpu_custom_call.1} parent=47 // pred_check
          %p287 = pneg %p48
        $region50: #{tpu_custom_call.1} parent=47 // pred_check_branch
          %289 = sbr.rel (%p287) target = $region52
        $region51: #{tpu_custom_call.1} parent=47 // pred_region
          %290 = dma.done %s283, 128
        $region52: #{tpu_custom_call.1} parent=47 // pred_fallthru
          _
        %s291 = sand.u32 %s61, 1
        %s292 = scalar_lea.sflag [#allocation6], %s291
        %s293 = sand.u32 %s61, 1
        %s294 = smul.addr %s293, 8
        %s295 = scalar_lea.vmem [#allocation5], %s294
        // Predicated region
        $region53: #{tpu_custom_call.1} parent=47 // pred_check
          %p296 = pneg %p74
        $region54: #{tpu_custom_call.1} parent=47 // pred_check_branch
          %298 = sbr.rel (%p296) target = $region56
        $region55: #{tpu_custom_call.1} parent=47 // pred_region
          %299 = dma.done %s292, 128
        $region56: #{tpu_custom_call.1} parent=47 // pred_fallthru
          _
        %s300 = sand.u32 %s35, 1
        %s301 = scalar_lea.sflag [#allocation3], %s300
        %s302 = sand.u32 %s35, 1
        %s303 = smul.addr %s302, 8
        %s304 = scalar_lea.vmem [#allocation2], %s303
        %p305 = pneg %p48
        %p306 = pneg %p45
        %s307 = sand.u32 %s61, 1
        %s308 = scalar_lea.sflag [#allocation6], %s307
        %s309 = sand.u32 %s61, 1
        %s310 = smul.addr %s309, 8
        %s311 = scalar_lea.vmem [#allocation5], %s310
        %p312 = pneg %p74
        %p313 = pneg %p71
        %p314 = pneg %p95
        %p315 = pneg %p92
        %p316 = pneg %p116
        %p317 = pneg %p113
        %p318 = pneg %p137
        %p319 = pneg %p134
        %p320 = pneg %p158
        %p321 = pneg %p155
        %p322 = pneg %p179
        %p323 = pneg %p176
        %p324 = pneg %p205
        %p325 = pneg %p202
        %s326 = sand.u32 %s192, 1
        %s327 = scalar_lea.sflag [#allocation4], %s326
        %s328 = sand.u32 %s192, 1
        %s329 = smul.addr %s328, 8
        %s330 = scalar_lea.vmem [#allocation7], %s329
        %v331 = vld [vmem:[%s286] sm:$0xff]
        %v332 = vld [vmem:[%s295] sm:$0xff]
        %v333 = vld [vmem:[%s2] sm:$0xff]
        %v334 = vld [vmem:[%s2 + $0x8] sm:$0xff]
        %v335 = vld [vmem:[%s2 + $0x10] sm:$0xff]
        %v336 = vld [vmem:[%s2 + $0x18] sm:$0xff]
        %vm337 = vcmask 261120
        %v339 = vsel %vm337, %v331, 0
        %341 = vmatprep.subr.mxu0 0.0
        %342 = vmatpush1.msra.mxu0 %v333
        %343 = vmatprep.subr.mxu0 0.0
        %344 = vmatpush1.msra.mxu0 %v334
        %345 = vmatprep.subr.mxu0 0.0
        %346 = vmatpush1.msra.mxu0 %v335
        %347 = vmatprep.subr.mxu0 0.0
        %348 = vmatpush1.msra.mxu0 %v336
        %349 = vmatprep.subr.mxu0 0.0
        %350 = vmatpush1.msra.mxu0 0.0
        %351 = vmatprep.subr.mxu0 0.0
        %352 = vmatpush1.msra.mxu0 0.0
        %353 = vmatprep.subr.mxu0 0.0
        %354 = vmatpush1.msra.mxu0 0.0
        %355 = vmatprep.subr.mxu0 0.0
        %356 = vmatpush1.msra.mxu0 0.0
        %357 = vmatprep.subr.mxu0 0.0
        %358 = vmatpush1.msra.mxu0 0.0
        %359 = vmatprep.subr.mxu0 0.0
        %360 = vmatpush1.msra.mxu0 0.0
        %361 = vmatprep.subr.mxu0 0.0
        %362 = vmatpush1.msra.mxu0 0.0
        %363 = vmatprep.subr.mxu0 0.0
        %364 = vmatpush1.msra.mxu0 0.0
        %365 = vmatprep.subr.mxu0 0.0
        %366 = vmatpush1.msra.mxu0 0.0
        %367 = vmatprep.subr.mxu0 0.0
        %368 = vmatpush1.msra.mxu0 0.0
        %369 = vmatprep.subr.mxu0 0.0
        %370 = vmatpush1.msra.mxu0 0.0
        %371 = vmatprep.subr.mxu0 0.0
        %372 = vmatpush1.msra.mxu0 0.0
        %373 = vmatprep.subr.mxu0 0.0
        %374 = vmatpush1.msra.mxu0 0.0
        %375 = vmatprep.subr.mxu0 0.0
        %376 = vmatpush1.msra.mxu0 0.0
        %377 = vmatprep.subr.mxu0 0.0
        %378 = vmatpush1.msra.mxu0 0.0
        %379 = vmatprep.subr.mxu0 0.0
        %380 = vmatpush1.msra.mxu0 0.0
        %381 = vmatprep.subr.mxu0 0.0
        %382 = vmatpush1.msra.mxu0 0.0
        %383 = vmatprep.subr.mxu0 0.0
        %384 = vmatpush1.msra.mxu0 0.0
        %385 = vmatprep.subr.mxu0 0.0
        %386 = vmatpush1.msra.mxu0 0.0
        %387 = vmatprep.subr.mxu0 0.0
        %388 = vmatpush1.msra.mxu0 0.0
        %389 = vmatprep.subr.mxu0 0.0
        %390 = vmatpush1.msra.mxu0 0.0
        %391 = vmatprep.subr.mxu0 0.0
        %392 = vmatpush1.msra.mxu0 0.0
        %393 = vmatprep.subr.mxu0 0.0
        %394 = vmatpush1.msra.mxu0 0.0
        %395 = vmatprep.subr.mxu0 0.0
        %396 = vmatpush1.msra.mxu0 0.0
        %397 = vmatprep.subr.mxu0 0.0
        %398 = vmatpush1.msra.mxu0 0.0
        %399 = vmatprep.subr.mxu0 0.0
        %400 = vmatpush1.msra.mxu0 0.0
        %401 = vmatprep.subr.mxu0 0.0
        %402 = vmatpush1.msra.mxu0 0.0
        %403 = vmatprep.subr.mxu0 0.0
        %404 = vmatpush1.msra.mxu0 0.0
        %405 = vmatprep.mubr.f32.mxu0 0.0
        %406 = vmatmul.mubr.f32.gmra.mrb[0].mxu0 %v339
        %v407 = vpop.f32.mrb[0].mxu0
        %v408 = vadd.f32 0.0, %v407
        %v409 = vpop.f32.mrb[0].mxu0
        %410 = vdwg.mxu0
        %v411 = vld [vmem:[%s3] sm:$0xff]
        %v412 = vld [vmem:[%s3 + $0x8] sm:$0xff]
        %v413 = vld [vmem:[%s3 + $0x10] sm:$0xff]
        %v414 = vld [vmem:[%s3 + $0x18] sm:$0xff]
        %v416 = vsel %vm337, %v332, 0
        %418 = vmatprep.subr.mxu0 0.0
        %419 = vmatpush1.msra.mxu0 %v411
        %420 = vmatprep.subr.mxu0 0.0
        %421 = vmatpush1.msra.mxu0 %v412
        %422 = vmatprep.subr.mxu0 0.0
        %423 = vmatpush1.msra.mxu0 %v413
        %424 = vmatprep.subr.mxu0 0.0
        %425 = vmatpush1.msra.mxu0 %v414
        %426 = vmatprep.subr.mxu0 0.0
        %427 = vmatpush1.msra.mxu0 0.0
        %428 = vmatprep.subr.mxu0 0.0
        %429 = vmatpush1.msra.mxu0 0.0
        %430 = vmatprep.subr.mxu0 0.0
        %431 = vmatpush1.msra.mxu0 0.0
        %432 = vmatprep.subr.mxu0 0.0
        %433 = vmatpush1.msra.mxu0 0.0
        %434 = vmatprep.subr.mxu0 0.0
        %435 = vmatpush1.msra.mxu0 0.0
        %436 = vmatprep.subr.mxu0 0.0
        %437 = vmatpush1.msra.mxu0 0.0
        %438 = vmatprep.subr.mxu0 0.0
        %439 = vmatpush1.msra.mxu0 0.0
        %440 = vmatprep.subr.mxu0 0.0
        %441 = vmatpush1.msra.mxu0 0.0
        %442 = vmatprep.subr.mxu0 0.0
        %443 = vmatpush1.msra.mxu0 0.0
        %444 = vmatprep.subr.mxu0 0.0
        %445 = vmatpush1.msra.mxu0 0.0
        %446 = vmatprep.subr.mxu0 0.0
        %447 = vmatpush1.msra.mxu0 0.0
        %448 = vmatprep.subr.mxu0 0.0
        %449 = vmatpush1.msra.mxu0 0.0
        %450 = vmatprep.subr.mxu0 0.0
        %451 = vmatpush1.msra.mxu0 0.0
        %452 = vmatprep.subr.mxu0 0.0
        %453 = vmatpush1.msra.mxu0 0.0
        %454 = vmatprep.subr.mxu0 0.0
        %455 = vmatpush1.msra.mxu0 0.0
        %456 = vmatprep.subr.mxu0 0.0
        %457 = vmatpush1.msra.mxu0 0.0
        %458 = vmatprep.subr.mxu0 0.0
        %459 = vmatpush1.msra.mxu0 0.0
        %460 = vmatprep.subr.mxu0 0.0
        %461 = vmatpush1.msra.mxu0 0.0
        %462 = vmatprep.subr.mxu0 0.0
        %463 = vmatpush1.msra.mxu0 0.0
        %464 = vmatprep.subr.mxu0 0.0
        %465 = vmatpush1.msra.mxu0 0.0
        %466 = vmatprep.subr.mxu0 0.0
        %467 = vmatpush1.msra.mxu0 0.0
        %468 = vmatprep.subr.mxu0 0.0
        %469 = vmatpush1.msra.mxu0 0.0
        %470 = vmatprep.subr.mxu0 0.0
        %471 = vmatpush1.msra.mxu0 0.0
        %472 = vmatprep.subr.mxu0 0.0
        %473 = vmatpush1.msra.mxu0 0.0
        %474 = vmatprep.subr.mxu0 0.0
        %475 = vmatpush1.msra.mxu0 0.0
        %476 = vmatprep.subr.mxu0 0.0
        %477 = vmatpush1.msra.mxu0 0.0
        %478 = vmatprep.subr.mxu0 0.0
        %479 = vmatpush1.msra.mxu0 0.0
        %480 = vmatprep.subr.mxu0 0.0
        %481 = vmatpush1.msra.mxu0 0.0
        %482 = vmatprep.mubr.f32.mxu0 0.0
        %483 = vmatmul.mubr.f32.gmra.mrb[0].mxu0 %v416
        %v484 = vpop.f32.mrb[0].mxu0
        %v485 = vadd.f32 0.0, %v484
        %v486 = vpop.f32.mrb[0].mxu0
        %487 = vdwg.mxu0
        %v488 = vld [vmem:[%s4] sm:$0xff]
        %v489 = vld [vmem:[%s4 + $0x8] sm:$0xff]
        %v490 = vld [vmem:[%s4 + $0x10] sm:$0xff]
        %v491 = vld [vmem:[%s4 + $0x18] sm:$0xff]
        %492 = vmatprep.subr.mxu0 0.0
        %493 = vmatpush1.msra.mxu0 %v488
        %494 = vmatprep.subr.mxu0 0.0
        %495 = vmatpush1.msra.mxu0 %v489
        %496 = vmatprep.subr.mxu0 0.0
        %497 = vmatpush1.msra.mxu0 %v490
        %498 = vmatprep.subr.mxu0 0.0
        %499 = vmatpush1.msra.mxu0 %v491
        %500 = vmatprep.subr.mxu0 0.0
        %501 = vmatpush1.msra.mxu0 0.0
        %502 = vmatprep.subr.mxu0 0.0
        %503 = vmatpush1.msra.mxu0 0.0
        %504 = vmatprep.subr.mxu0 0.0
        %505 = vmatpush1.msra.mxu0 0.0
        %506 = vmatprep.subr.mxu0 0.0
        %507 = vmatpush1.msra.mxu0 0.0
        %508 = vmatprep.subr.mxu0 0.0
        %509 = vmatpush1.msra.mxu0 0.0
        %510 = vmatprep.subr.mxu0 0.0
        %511 = vmatpush1.msra.mxu0 0.0
        %512 = vmatprep.subr.mxu0 0.0
        %513 = vmatpush1.msra.mxu0 0.0
        %514 = vmatprep.subr.mxu0 0.0
        %515 = vmatpush1.msra.mxu0 0.0
        %516 = vmatprep.subr.mxu0 0.0
        %517 = vmatpush1.msra.mxu0 0.0
        %518 = vmatprep.subr.mxu0 0.0
        %519 = vmatpush1.msra.mxu0 0.0
        %520 = vmatprep.subr.mxu0 0.0
        %521 = vmatpush1.msra.mxu0 0.0
        %522 = vmatprep.subr.mxu0 0.0
        %523 = vmatpush1.msra.mxu0 0.0
        %524 = vmatprep.subr.mxu0 0.0
        %525 = vmatpush1.msra.mxu0 0.0
        %526 = vmatprep.subr.mxu0 0.0
        %527 = vmatpush1.msra.mxu0 0.0
        %528 = vmatprep.subr.mxu0 0.0
        %529 = vmatpush1.msra.mxu0 0.0
        %530 = vmatprep.subr.mxu0 0.0
        %531 = vmatpush1.msra.mxu0 0.0
        %532 = vmatprep.subr.mxu0 0.0
        %533 = vmatpush1.msra.mxu0 0.0
        %534 = vmatprep.subr.mxu0 0.0
        %535 = vmatpush1.msra.mxu0 0.0
        %536 = vmatprep.subr.mxu0 0.0
        %537 = vmatpush1.msra.mxu0 0.0
        %538 = vmatprep.subr.mxu0 0.0
        %539 = vmatpush1.msra.mxu0 0.0
        %540 = vmatprep.subr.mxu0 0.0
        %541 = vmatpush1.msra.mxu0 0.0
        %542 = vmatprep.subr.mxu0 0.0
        %543 = vmatpush1.msra.mxu0 0.0
        %544 = vmatprep.subr.mxu0 0.0
        %545 = vmatpush1.msra.mxu0 0.0
        %546 = vmatprep.subr.mxu0 0.0
        %547 = vmatpush1.msra.mxu0 0.0
        %548 = vmatprep.subr.mxu0 0.0
        %549 = vmatpush1.msra.mxu0 0.0
        %550 = vmatprep.subr.mxu0 0.0
        %551 = vmatpush1.msra.mxu0 0.0
        %552 = vmatprep.subr.mxu0 0.0
        %553 = vmatpush1.msra.mxu0 0.0
        %554 = vmatprep.subr.mxu0 0.0
        %555 = vmatpush1.msra.mxu0 0.0
        %556 = vmatprep.mubr.f32.mxu0 0.0
        %557 = vmatmul.mubr.f32.gmra.mrb[0].mxu0 %v416
        %v558 = vpop.f32.mrb[0].mxu0
        %v559 = vadd.f32 0.0, %v558
        %v560 = vpop.f32.mrb[0].mxu0
        %561 = vdwg.mxu0
        %v562 = vld [vmem:[%s5] sm:$0xff]
        %v563 = vld [vmem:[%s5 + $0x8] sm:$0xff]
        %v564 = vld [vmem:[%s5 + $0x10] sm:$0xff]
        %v565 = vld [vmem:[%s5 + $0x18] sm:$0xff]
        %v566 = vld [vmem:[%s5 + $0x20] sm:$0xff]
        %v567 = vld [vmem:[%s5 + $0x28] sm:$0xff]
        %v568 = vld [vmem:[%s5 + $0x30] sm:$0xff]
        %v569 = vld [vmem:[%s5 + $0x38] sm:$0xff]
        %vm570 = vcmask 130048
        %v572 = vsel %vm570, %v408, 0
        %v575 = vsel %vm570, %v485, 0
        %577 = vmatprep.subr.mxu0 0.0
        %578 = vmatpush1.xpose.msra.mxu0 %v575
        %579 = vmatprep.subr.mxu0 0.0
        %580 = vmatpush1.xpose.msra.mxu0 0.0
        %581 = vmatprep.subr.mxu0 0.0
        %582 = vmatpush1.xpose.msra.mxu0 0.0
        %583 = vmatprep.subr.mxu0 0.0
        %584 = vmatpush1.xpose.msra.mxu0 0.0
        %585 = vmatprep.subr.mxu0 0.0
        %586 = vmatpush1.xpose.msra.mxu0 0.0
        %587 = vmatprep.subr.mxu0 0.0
        %588 = vmatpush1.xpose.msra.mxu0 0.0
        %589 = vmatprep.subr.mxu0 0.0
        %590 = vmatpush1.xpose.msra.mxu0 0.0
        %591 = vmatprep.subr.mxu0 0.0
        %592 = vmatpush1.xpose.msra.mxu0 0.0
        %593 = vmatprep.subr.mxu0 0.0
        %594 = vmatpush1.xpose.msra.mxu0 0.0
        %595 = vmatprep.subr.mxu0 0.0
        %596 = vmatpush1.xpose.msra.mxu0 0.0
        %597 = vmatprep.subr.mxu0 0.0
        %598 = vmatpush1.xpose.msra.mxu0 0.0
        %599 = vmatprep.subr.mxu0 0.0
        %600 = vmatpush1.xpose.msra.mxu0 0.0
        %601 = vmatprep.subr.mxu0 0.0
        %602 = vmatpush1.xpose.msra.mxu0 0.0
        %603 = vmatprep.subr.mxu0 0.0
        %604 = vmatpush1.xpose.msra.mxu0 0.0
        %605 = vmatprep.subr.mxu0 0.0
        %606 = vmatpush1.xpose.msra.mxu0 0.0
        %607 = vmatprep.subr.mxu0 0.0
        %608 = vmatpush1.xpose.msra.mxu0 0.0
        %609 = vmatprep.subr.mxu0 0.0
        %610 = vmatpush1.xpose.msra.mxu0 0.0
        %611 = vmatprep.subr.mxu0 0.0
        %612 = vmatpush1.xpose.msra.mxu0 0.0
        %613 = vmatprep.subr.mxu0 0.0
        %614 = vmatpush1.xpose.msra.mxu0 0.0
        %615 = vmatprep.subr.mxu0 0.0
        %616 = vmatpush1.xpose.msra.mxu0 0.0
        %617 = vmatprep.subr.mxu0 0.0
        %618 = vmatpush1.xpose.msra.mxu0 0.0
        %619 = vmatprep.subr.mxu0 0.0
        %620 = vmatpush1.xpose.msra.mxu0 0.0
        %621 = vmatprep.subr.mxu0 0.0
        %622 = vmatpush1.xpose.msra.mxu0 0.0
        %623 = vmatprep.subr.mxu0 0.0
        %624 = vmatpush1.xpose.msra.mxu0 0.0
        %625 = vmatprep.subr.mxu0 0.0
        %626 = vmatpush1.xpose.msra.mxu0 0.0
        %627 = vmatprep.subr.mxu0 0.0
        %628 = vmatpush1.xpose.msra.mxu0 0.0
        %629 = vmatprep.subr.mxu0 0.0
        %630 = vmatpush1.xpose.msra.mxu0 0.0
        %631 = vmatprep.subr.mxu0 0.0
        %632 = vmatpush1.xpose.msra.mxu0 0.0
        %633 = vmatprep.subr.mxu0 0.0
        %634 = vmatpush1.xpose.msra.mxu0 0.0
        %635 = vmatprep.subr.mxu0 0.0
        %636 = vmatpush1.xpose.msra.mxu0 0.0
        %637 = vmatprep.subr.mxu0 0.0
        %638 = vmatpush1.xpose.msra.mxu0 0.0
        %639 = vmatprep.subr.mxu0 0.0
        %640 = vmatpush1.xpose.msra.mxu0 0.0
        %641 = vmatprep.mubr.f32.mxu0 0.0
        %642 = vmatmul.mubr.f32.gmra.mrb[0].mxu0 %v572
        %v643 = vpop.f32.mrb[0].mxu0
        %v644 = vadd.f32 0.0, %v643
        %v645 = vpop.f32.mrb[0].mxu0
        %646 = vdwg.mxu0
        %v647 = vmul.f32 %v644, 0.17677669
        %vm648 = vcmask 64512
        %v649 = vsel %vm648, %v647, -inf
        %650 = vmax.xlane.f32.xlu0 %v649
        %v651 = vpop.xlane.xlu0 %650
        %v652 = vsub.f32 %v647, %v651
        %v653 = vmul.f32 %v652, 1.442695
        %v654 = vpow.pop %v653
        %v655 = vsel %vm648, %v654, 0.0
        %656 = vadd.xlane.f32.xlu0 %v655
        %v657 = vpop.xlane.xlu0 %656
        %v658 = vrcp.pop %v657
        %v659 = vmul.f32 %v654, %v658
        %v661 = vsel %vm648, %v659, 0
        %663 = vmatprep.subr.mxu0 0.0
        %664 = vmatpush1.msra.mxu0 %v559
        %665 = vmatprep.subr.mxu0 0.0
        %666 = vmatpush1.msra.mxu0 0.0
        %667 = vmatprep.subr.mxu0 0.0
        %668 = vmatpush1.msra.mxu0 0.0
        %669 = vmatprep.subr.mxu0 0.0
        %670 = vmatpush1.msra.mxu0 0.0
        %671 = vmatprep.subr.mxu0 0.0
        %672 = vmatpush1.msra.mxu0 0.0
        %673 = vmatprep.subr.mxu0 0.0
        %674 = vmatpush1.msra.mxu0 0.0
        %675 = vmatprep.subr.mxu0 0.0
        %676 = vmatpush1.msra.mxu0 0.0
        %677 = vmatprep.subr.mxu0 0.0
        %678 = vmatpush1.msra.mxu0 0.0
        %679 = vmatprep.subr.mxu0 0.0
        %680 = vmatpush1.msra.mxu0 0.0
        %681 = vmatprep.subr.mxu0 0.0
        %682 = vmatpush1.msra.mxu0 0.0
        %683 = vmatprep.subr.mxu0 0.0
        %684 = vmatpush1.msra.mxu0 0.0
        %685 = vmatprep.subr.mxu0 0.0
        %686 = vmatpush1.msra.mxu0 0.0
        %687 = vmatprep.subr.mxu0 0.0
        %688 = vmatpush1.msra.mxu0 0.0
        %689 = vmatprep.subr.mxu0 0.0
        %690 = vmatpush1.msra.mxu0 0.0
        %691 = vmatprep.subr.mxu0 0.0
        %692 = vmatpush1.msra.mxu0 0.0
        %693 = vmatprep.subr.mxu0 0.0
        %694 = vmatpush1.msra.mxu0 0.0
        %695 = vmatprep.subr.mxu0 0.0
        %696 = vmatpush1.msra.mxu0 0.0
        %697 = vmatprep.subr.mxu0 0.0
        %698 = vmatpush1.msra.mxu0 0.0
        %699 = vmatprep.subr.mxu0 0.0
        %700 = vmatpush1.msra.mxu0 0.0
        %701 = vmatprep.subr.mxu0 0.0
        %702 = vmatpush1.msra.mxu0 0.0
        %703 = vmatprep.subr.mxu0 0.0
        %704 = vmatpush1.msra.mxu0 0.0
        %705 = vmatprep.subr.mxu0 0.0
        %706 = vmatpush1.msra.mxu0 0.0
        %707 = vmatprep.subr.mxu0 0.0
        %708 = vmatpush1.msra.mxu0 0.0
        %709 = vmatprep.subr.mxu0 0.0
        %710 = vmatpush1.msra.mxu0 0.0
        %711 = vmatprep.subr.mxu0 0.0
        %712 = vmatpush1.msra.mxu0 0.0
        %713 = vmatprep.subr.mxu0 0.0
        %714 = vmatpush1.msra.mxu0 0.0
        %715 = vmatprep.subr.mxu0 0.0
        %716 = vmatpush1.msra.mxu0 0.0
        %717 = vmatprep.subr.mxu0 0.0
        %718 = vmatpush1.msra.mxu0 0.0
        %719 = vmatprep.subr.mxu0 0.0
        %720 = vmatpush1.msra.mxu0 0.0
        %721 = vmatprep.subr.mxu0 0.0
        %722 = vmatpush1.msra.mxu0 0.0
        %723 = vmatprep.subr.mxu0 0.0
        %724 = vmatpush1.msra.mxu0 0.0
        %725 = vmatprep.subr.mxu0 0.0
        %726 = vmatpush1.msra.mxu0 0.0
        %727 = vmatprep.mubr.f32.mxu0 0.0
        %728 = vmatmul.mubr.f32.gmra.mrb[0].mxu0 %v661
        %v729 = vpop.f32.mrb[0].mxu0
        %v730 = vadd.f32 0.0, %v729
        %v731 = vpop.f32.mrb[0].mxu0
        %732 = vdwg.mxu0
        %733 = vrot.lane.b32.xlu0 %v408, 112
        %v734 = vpop.permute.xlu0 %733
        %735 = vrot.lane.b32.xlu0 %v485, 112
        %v736 = vpop.permute.xlu0 %735
        %v737 = vsel %vm570, %v734, 0
        %v739 = vsel %vm570, %v736, 0
        %741 = vmatprep.subr.mxu0 0.0
        %742 = vmatpush1.xpose.msra.mxu0 %v739
        %743 = vmatprep.subr.mxu0 0.0
        %744 = vmatpush1.xpose.msra.mxu0 0.0
        %745 = vmatprep.subr.mxu0 0.0
        %746 = vmatpush1.xpose.msra.mxu0 0.0
        %747 = vmatprep.subr.mxu0 0.0
        %748 = vmatpush1.xpose.msra.mxu0 0.0
        %749 = vmatprep.subr.mxu0 0.0
        %750 = vmatpush1.xpose.msra.mxu0 0.0
        %751 = vmatprep.subr.mxu0 0.0
        %752 = vmatpush1.xpose.msra.mxu0 0.0
        %753 = vmatprep.subr.mxu0 0.0
        %754 = vmatpush1.xpose.msra.mxu0 0.0
        %755 = vmatprep.subr.mxu0 0.0
        %756 = vmatpush1.xpose.msra.mxu0 0.0
        %757 = vmatprep.subr.mxu0 0.0
        %758 = vmatpush1.xpose.msra.mxu0 0.0
        %759 = vmatprep.subr.mxu0 0.0
        %760 = vmatpush1.xpose.msra.mxu0 0.0
        %761 = vmatprep.subr.mxu0 0.0
        %762 = vmatpush1.xpose.msra.mxu0 0.0
        %763 = vmatprep.subr.mxu0 0.0
        %764 = vmatpush1.xpose.msra.mxu0 0.0
        %765 = vmatprep.subr.mxu0 0.0
        %766 = vmatpush1.xpose.msra.mxu0 0.0
        %767 = vmatprep.subr.mxu0 0.0
        %768 = vmatpush1.xpose.msra.mxu0 0.0
        %769 = vmatprep.subr.mxu0 0.0
        %770 = vmatpush1.xpose.msra.mxu0 0.0
        %771 = vmatprep.subr.mxu0 0.0
        %772 = vmatpush1.xpose.msra.mxu0 0.0
        %773 = vmatprep.subr.mxu0 0.0
        %774 = vmatpush1.xpose.msra.mxu0 0.0
        %775 = vmatprep.subr.mxu0 0.0
        %776 = vmatpush1.xpose.msra.mxu0 0.0
        %777 = vmatprep.subr.mxu0 0.0
        %778 = vmatpush1.xpose.msra.mxu0 0.0
        %779 = vmatprep.subr.mxu0 0.0
        %780 = vmatpush1.xpose.msra.mxu0 0.0
        %781 = vmatprep.subr.mxu0 0.0
        %782 = vmatpush1.xpose.msra.mxu0 0.0
        %783 = vmatprep.subr.mxu0 0.0
        %784 = vmatpush1.xpose.msra.mxu0 0.0
        %785 = vmatprep.subr.mxu0 0.0
        %786 = vmatpush1.xpose.msra.mxu0 0.0
        %787 = vmatprep.subr.mxu0 0.0
        %788 = vmatpush1.xpose.msra.mxu0 0.0
        %789 = vmatprep.subr.mxu0 0.0
        %790 = vmatpush1.xpose.msra.mxu0 0.0
        %791 = vmatprep.subr.mxu0 0.0
        %792 = vmatpush1.xpose.msra.mxu0 0.0
        %793 = vmatprep.subr.mxu0 0.0
        %794 = vmatpush1.xpose.msra.mxu0 0.0
        %795 = vmatprep.subr.mxu0 0.0
        %796 = vmatpush1.xpose.msra.mxu0 0.0
        %797 = vmatprep.subr.mxu0 0.0
        %798 = vmatpush1.xpose.msra.mxu0 0.0
        %799 = vmatprep.subr.mxu0 0.0
        %800 = vmatpush1.xpose.msra.mxu0 0.0
        %801 = vmatprep.subr.mxu0 0.0
        %802 = vmatpush1.xpose.msra.mxu0 0.0
        %803 = vmatprep.subr.mxu0 0.0
        %804 = vmatpush1.xpose.msra.mxu0 0.0
        %805 = vmatprep.mubr.f32.mxu0 0.0
        %806 = vmatmul.mubr.f32.gmra.mrb[0].mxu0 %v737
        %v807 = vpop.f32.mrb[0].mxu0
        %v808 = vadd.f32 0.0, %v807
        %v809 = vpop.f32.mrb[0].mxu0
        %810 = vdwg.mxu0
        %v811 = vmul.f32 %v808, 0.17677669
        %v812 = vsel %vm648, %v811, -inf
        %813 = vmax.xlane.f32.xlu0 %v812
        %v814 = vpop.xlane.xlu0 %813
        %v815 = vsub.f32 %v811, %v814
        %v816 = vmul.f32 %v815, 1.442695
        %v817 = vpow.pop %v816
        %v818 = vsel %vm648, %v817, 0.0
        %819 = vadd.xlane.f32.xlu0 %v818
        %v820 = vpop.xlane.xlu0 %819
        %v821 = vrcp.pop %v820
        %v822 = vmul.f32 %v817, %v821
        %824 = vrot.lane.b32.xlu0 %v559, 112
        %v825 = vpop.permute.xlu0 %824
        %v828 = vsel %vm648, %v822, 0
        %830 = vmatprep.subr.mxu0 0.0
        %831 = vmatpush1.msra.mxu0 %v825
        %832 = vmatprep.subr.mxu0 0.0
        %833 = vmatpush1.msra.mxu0 0.0
        %834 = vmatprep.subr.mxu0 0.0
        %835 = vmatpush1.msra.mxu0 0.0
        %836 = vmatprep.subr.mxu0 0.0
        %837 = vmatpush1.msra.mxu0 0.0
        %838 = vmatprep.subr.mxu0 0.0
        %839 = vmatpush1.msra.mxu0 0.0
        %840 = vmatprep.subr.mxu0 0.0
        %841 = vmatpush1.msra.mxu0 0.0
        %842 = vmatprep.subr.mxu0 0.0
        %843 = vmatpush1.msra.mxu0 0.0
        %844 = vmatprep.subr.mxu0 0.0
        %845 = vmatpush1.msra.mxu0 0.0
        %846 = vmatprep.subr.mxu0 0.0
        %847 = vmatpush1.msra.mxu0 0.0
        %848 = vmatprep.subr.mxu0 0.0
        %849 = vmatpush1.msra.mxu0 0.0
        %850 = vmatprep.subr.mxu0 0.0
        %851 = vmatpush1.msra.mxu0 0.0
        %852 = vmatprep.subr.mxu0 0.0
        %853 = vmatpush1.msra.mxu0 0.0
        %854 = vmatprep.subr.mxu0 0.0
        %855 = vmatpush1.msra.mxu0 0.0
        %856 = vmatprep.subr.mxu0 0.0
        %857 = vmatpush1.msra.mxu0 0.0
        %858 = vmatprep.subr.mxu0 0.0
        %859 = vmatpush1.msra.mxu0 0.0
        %860 = vmatprep.subr.mxu0 0.0
        %861 = vmatpush1.msra.mxu0 0.0
        %862 = vmatprep.subr.mxu0 0.0
        %863 = vmatpush1.msra.mxu0 0.0
        %864 = vmatprep.subr.mxu0 0.0
        %865 = vmatpush1.msra.mxu0 0.0
        %866 = vmatprep.subr.mxu0 0.0
        %867 = vmatpush1.msra.mxu0 0.0
        %868 = vmatprep.subr.mxu0 0.0
        %869 = vmatpush1.msra.mxu0 0.0
        %870 = vmatprep.subr.mxu0 0.0
        %871 = vmatpush1.msra.mxu0 0.0
        %872 = vmatprep.subr.mxu0 0.0
        %873 = vmatpush1.msra.mxu0 0.0
        %874 = vmatprep.subr.mxu0 0.0
        %875 = vmatpush1.msra.mxu0 0.0
        %876 = vmatprep.subr.mxu0 0.0
        %877 = vmatpush1.msra.mxu0 0.0
        %878 = vmatprep.subr.mxu0 0.0
        %879 = vmatpush1.msra.mxu0 0.0
        %880 = vmatprep.subr.mxu0 0.0
        %881 = vmatpush1.msra.mxu0 0.0
        %882 = vmatprep.subr.mxu0 0.0
        %883 = vmatpush1.msra.mxu0 0.0
        %884 = vmatprep.subr.mxu0 0.0
        %885 = vmatpush1.msra.mxu0 0.0
        %886 = vmatprep.subr.mxu0 0.0
        %887 = vmatpush1.msra.mxu0 0.0
        %888 = vmatprep.subr.mxu0 0.0
        %889 = vmatpush1.msra.mxu0 0.0
        %890 = vmatprep.subr.mxu0 0.0
        %891 = vmatpush1.msra.mxu0 0.0
        %892 = vmatprep.subr.mxu0 0.0
        %893 = vmatpush1.msra.mxu0 0.0
        %894 = vmatprep.mubr.f32.mxu0 0.0
        %895 = vmatmul.mubr.f32.gmra.mrb[0].mxu0 %v828
        %v896 = vpop.f32.mrb[0].mxu0
        %v897 = vadd.f32 0.0, %v896
        %v898 = vpop.f32.mrb[0].mxu0
        %899 = vdwg.mxu0
        %v901 = vsel %vm570, %v897, 0
        %903 = vmatprep.subr.mxu0 0.0
        %904 = vmatpush1.msra.mxu0 %v564
        %905 = vmatprep.subr.mxu0 0.0
        %906 = vmatpush1.msra.mxu0 %v565
        %907 = vmatprep.subr.mxu0 0.0
        %908 = vmatpush1.msra.mxu0 0.0
        %909 = vmatprep.subr.mxu0 0.0
        %910 = vmatpush1.msra.mxu0 0.0
        %911 = vmatprep.subr.mxu0 0.0
        %912 = vmatpush1.msra.mxu0 0.0
        %913 = vmatprep.subr.mxu0 0.0
        %914 = vmatpush1.msra.mxu0 0.0
        %915 = vmatprep.subr.mxu0 0.0
        %916 = vmatpush1.msra.mxu0 0.0
        %917 = vmatprep.subr.mxu0 0.0
        %918 = vmatpush1.msra.mxu0 0.0
        %919 = vmatprep.subr.mxu0 0.0
        %920 = vmatpush1.msra.mxu0 0.0
        %921 = vmatprep.subr.mxu0 0.0
        %922 = vmatpush1.msra.mxu0 0.0
        %923 = vmatprep.subr.mxu0 0.0
        %924 = vmatpush1.msra.mxu0 0.0
        %925 = vmatprep.subr.mxu0 0.0
        %926 = vmatpush1.msra.mxu0 0.0
        %927 = vmatprep.subr.mxu0 0.0
        %928 = vmatpush1.msra.mxu0 0.0
        %929 = vmatprep.subr.mxu0 0.0
        %930 = vmatpush1.msra.mxu0 0.0
        %931 = vmatprep.subr.mxu0 0.0
        %932 = vmatpush1.msra.mxu0 0.0
        %933 = vmatprep.subr.mxu0 0.0
        %934 = vmatpush1.msra.mxu0 0.0
        %935 = vmatprep.subr.mxu0 0.0
        %936 = vmatpush1.msra.mxu0 0.0
        %937 = vmatprep.subr.mxu0 0.0
        %938 = vmatpush1.msra.mxu0 0.0
        %939 = vmatprep.subr.mxu0 0.0
        %940 = vmatpush1.msra.mxu0 0.0
        %941 = vmatprep.subr.mxu0 0.0
        %942 = vmatpush1.msra.mxu0 0.0
        %943 = vmatprep.subr.mxu0 0.0
        %944 = vmatpush1.msra.mxu0 0.0
        %945 = vmatprep.subr.mxu0 0.0
        %946 = vmatpush1.msra.mxu0 0.0
        %947 = vmatprep.subr.mxu0 0.0
        %948 = vmatpush1.msra.mxu0 0.0
        %949 = vmatprep.subr.mxu0 0.0
        %950 = vmatpush1.msra.mxu0 0.0
        %951 = vmatprep.subr.mxu0 0.0
        %952 = vmatpush1.msra.mxu0 0.0
        %953 = vmatprep.subr.mxu0 0.0
        %954 = vmatpush1.msra.mxu0 0.0
        %955 = vmatprep.subr.mxu0 0.0
        %956 = vmatpush1.msra.mxu0 0.0
        %957 = vmatprep.subr.mxu0 0.0
        %958 = vmatpush1.msra.mxu0 0.0
        %959 = vmatprep.subr.mxu0 0.0
        %960 = vmatpush1.msra.mxu0 0.0
        %961 = vmatprep.subr.mxu0 0.0
        %962 = vmatpush1.msra.mxu0 0.0
        %963 = vmatprep.subr.mxu0 0.0
        %964 = vmatpush1.msra.mxu0 0.0
        %965 = vmatprep.subr.mxu0 0.0
        %966 = vmatpush1.msra.mxu0 0.0
        %967 = vmatprep.mubr.f32.mxu0 0.0
        %968 = vmatmul.mubr.f32.gmra.mrb[0].mxu0 %v901
        %v969 = vpop.f32.mrb[0].mxu0
        %v970 = vadd.f32 0.0, %v969
        %v971 = vpop.f32.mrb[0].mxu0
        %972 = vdwg.mxu0
        %v974 = vsel %vm570, %v730, 0
        %976 = vmatprep.subr.mxu0 0.0
        %977 = vmatpush1.msra.mxu0 %v562
        %978 = vmatprep.subr.mxu0 0.0
        %979 = vmatpush1.msra.mxu0 %v563
        %980 = vmatprep.subr.mxu0 0.0
        %981 = vmatpush1.msra.mxu0 0.0
        %982 = vmatprep.subr.mxu0 0.0
        %983 = vmatpush1.msra.mxu0 0.0
        %984 = vmatprep.subr.mxu0 0.0
        %985 = vmatpush1.msra.mxu0 0.0
        %986 = vmatprep.subr.mxu0 0.0
        %987 = vmatpush1.msra.mxu0 0.0
        %988 = vmatprep.subr.mxu0 0.0
        %989 = vmatpush1.msra.mxu0 0.0
        %990 = vmatprep.subr.mxu0 0.0
        %991 = vmatpush1.msra.mxu0 0.0
        %992 = vmatprep.subr.mxu0 0.0
        %993 = vmatpush1.msra.mxu0 0.0
        %994 = vmatprep.subr.mxu0 0.0
        %995 = vmatpush1.msra.mxu0 0.0
        %996 = vmatprep.subr.mxu0 0.0
        %997 = vmatpush1.msra.mxu0 0.0
        %998 = vmatprep.subr.mxu0 0.0
        %999 = vmatpush1.msra.mxu0 0.0
        %1000 = vmatprep.subr.mxu0 0.0
        %1001 = vmatpush1.msra.mxu0 0.0
        %1002 = vmatprep.subr.mxu0 0.0
        %1003 = vmatpush1.msra.mxu0 0.0
        %1004 = vmatprep.subr.mxu0 0.0
        %1005 = vmatpush1.msra.mxu0 0.0
        %1006 = vmatprep.subr.mxu0 0.0
        %1007 = vmatpush1.msra.mxu0 0.0
        %1008 = vmatprep.subr.mxu0 0.0
        %1009 = vmatpush1.msra.mxu0 0.0
        %1010 = vmatprep.subr.mxu0 0.0
        %1011 = vmatpush1.msra.mxu0 0.0
        %1012 = vmatprep.subr.mxu0 0.0
        %1013 = vmatpush1.msra.mxu0 0.0
        %1014 = vmatprep.subr.mxu0 0.0
        %1015 = vmatpush1.msra.mxu0 0.0
        %1016 = vmatprep.subr.mxu0 0.0
        %1017 = vmatpush1.msra.mxu0 0.0
        %1018 = vmatprep.subr.mxu0 0.0
        %1019 = vmatpush1.msra.mxu0 0.0
        %1020 = vmatprep.subr.mxu0 0.0
        %1021 = vmatpush1.msra.mxu0 0.0
        %1022 = vmatprep.subr.mxu0 0.0
        %1023 = vmatpush1.msra.mxu0 0.0
        %1024 = vmatprep.subr.mxu0 0.0
        %1025 = vmatpush1.msra.mxu0 0.0
        %1026 = vmatprep.subr.mxu0 0.0
        %1027 = vmatpush1.msra.mxu0 0.0
        %1028 = vmatprep.subr.mxu0 0.0
        %1029 = vmatpush1.msra.mxu0 0.0
        %1030 = vmatprep.subr.mxu0 0.0
        %1031 = vmatpush1.msra.mxu0 0.0
        %1032 = vmatprep.subr.mxu0 0.0
        %1033 = vmatpush1.msra.mxu0 0.0
        %1034 = vmatprep.subr.mxu0 0.0
        %1035 = vmatpush1.msra.mxu0 0.0
        %1036 = vmatprep.subr.mxu0 0.0
        %1037 = vmatpush1.msra.mxu0 0.0
        %1038 = vmatprep.subr.mxu0 0.0
        %1039 = vmatpush1.msra.mxu0 0.0
        %1040 = vmatprep.mubr.f32.mxu0 0.0
        %1041 = vmatmul.mubr.f32.gmra.mrb[0].mxu0 %v974
        %v1042 = vpop.f32.mrb[0].mxu0
        %v1043 = vadd.f32 %v970, %v1042
        %v1044 = vpop.f32.mrb[0].mxu0
        %1045 = vdwg.mxu0
        %1046 = vrot.lane.b32.xlu0 %v408, 96
        %v1047 = vpop.permute.xlu0 %1046
        %1048 = vrot.lane.b32.xlu0 %v485, 96
        %v1049 = vpop.permute.xlu0 %1048
        %v1050 = vsel %vm570, %v1047, 0
        %v1052 = vsel %vm570, %v1049, 0
        %1054 = vmatprep.subr.mxu0 0.0
        %1055 = vmatpush1.xpose.msra.mxu0 %v1052
        %1056 = vmatprep.subr.mxu0 0.0
        %1057 = vmatpush1.xpose.msra.mxu0 0.0
        %1058 = vmatprep.subr.mxu0 0.0
        %1059 = vmatpush1.xpose.msra.mxu0 0.0
        %1060 = vmatprep.subr.mxu0 0.0
        %1061 = vmatpush1.xpose.msra.mxu0 0.0
        %1062 = vmatprep.subr.mxu0 0.0
        %1063 = vmatpush1.xpose.msra.mxu0 0.0
        %1064 = vmatprep.subr.mxu0 0.0
        %1065 = vmatpush1.xpose.msra.mxu0 0.0
        %1066 = vmatprep.subr.mxu0 0.0
        %1067 = vmatpush1.xpose.msra.mxu0 0.0
        %1068 = vmatprep.subr.mxu0 0.0
        %1069 = vmatpush1.xpose.msra.mxu0 0.0
        %1070 = vmatprep.subr.mxu0 0.0
        %1071 = vmatpush1.xpose.msra.mxu0 0.0
        %1072 = vmatprep.subr.mxu0 0.0
        %1073 = vmatpush1.xpose.msra.mxu0 0.0
        %1074 = vmatprep.subr.mxu0 0.0
        %1075 = vmatpush1.xpose.msra.mxu0 0.0
        %1076 = vmatprep.subr.mxu0 0.0
        %1077 = vmatpush1.xpose.msra.mxu0 0.0
        %1078 = vmatprep.subr.mxu0 0.0
        %1079 = vmatpush1.xpose.msra.mxu0 0.0
        %1080 = vmatprep.subr.mxu0 0.0
        %1081 = vmatpush1.xpose.msra.mxu0 0.0
        %1082 = vmatprep.subr.mxu0 0.0
        %1083 = vmatpush1.xpose.msra.mxu0 0.0
        %1084 = vmatprep.subr.mxu0 0.0
        %1085 = vmatpush1.xpose.msra.mxu0 0.0
        %1086 = vmatprep.subr.mxu0 0.0
        %1087 = vmatpush1.xpose.msra.mxu0 0.0
        %1088 = vmatprep.subr.mxu0 0.0
        %1089 = vmatpush1.xpose.msra.mxu0 0.0
        %1090 = vmatprep.subr.mxu0 0.0
        %1091 = vmatpush1.xpose.msra.mxu0 0.0
        %1092 = vmatprep.subr.mxu0 0.0
        %1093 = vmatpush1.xpose.msra.mxu0 0.0
        %1094 = vmatprep.subr.mxu0 0.0
        %1095 = vmatpush1.xpose.msra.mxu0 0.0
        %1096 = vmatprep.subr.mxu0 0.0
        %1097 = vmatpush1.xpose.msra.mxu0 0.0
        %1098 = vmatprep.subr.mxu0 0.0
        %1099 = vmatpush1.xpose.msra.mxu0 0.0
        %1100 = vmatprep.subr.mxu0 0.0
        %1101 = vmatpush1.xpose.msra.mxu0 0.0
        %1102 = vmatprep.subr.mxu0 0.0
        %1103 = vmatpush1.xpose.msra.mxu0 0.0
        %1104 = vmatprep.subr.mxu0 0.0
        %1105 = vmatpush1.xpose.msra.mxu0 0.0
        %1106 = vmatprep.subr.mxu0 0.0
        %1107 = vmatpush1.xpose.msra.mxu0 0.0
        %1108 = vmatprep.subr.mxu0 0.0
        %1109 = vmatpush1.xpose.msra.mxu0 0.0
        %1110 = vmatprep.subr.mxu0 0.0
        %1111 = vmatpush1.xpose.msra.mxu0 0.0
        %1112 = vmatprep.subr.mxu0 0.0
        %1113 = vmatpush1.xpose.msra.mxu0 0.0
        %1114 = vmatprep.subr.mxu0 0.0
        %1115 = vmatpush1.xpose.msra.mxu0 0.0
        %1116 = vmatprep.subr.mxu0 0.0
        %1117 = vmatpush1.xpose.msra.mxu0 0.0
        %1118 = vmatprep.mubr.f32.mxu0 0.0
        %1119 = vmatmul.mubr.f32.gmra.mrb[0].mxu0 %v1050
        %v1120 = vpop.f32.mrb[0].mxu0
        %v1121 = vadd.f32 0.0, %v1120
        %v1122 = vpop.f32.mrb[0].mxu0
        %1123 = vdwg.mxu0
        %v1124 = vmul.f32 %v1121, 0.17677669
        %v1125 = vsel %vm648, %v1124, -inf
        %1126 = vmax.xlane.f32.xlu0 %v1125
        %v1127 = vpop.xlane.xlu0 %1126
        %v1128 = vsub.f32 %v1124, %v1127
        %v1129 = vmul.f32 %v1128, 1.442695
        %v1130 = vpow.pop %v1129
        %v1131 = vsel %vm648, %v1130, 0.0
        %1132 = vadd.xlane.f32.xlu0 %v1131
        %v1133 = vpop.xlane.xlu0 %1132
        %v1134 = vrcp.pop %v1133
        %v1135 = vmul.f32 %v1130, %v1134
        %1136 = vrot.lane.b32.xlu0 %v559, 96
        %v1137 = vpop.permute.xlu0 %1136
        %v1140 = vsel %vm648, %v1135, 0
        %1142 = vmatprep.subr.mxu0 0.0
        %1143 = vmatpush1.msra.mxu0 %v1137
        %1144 = vmatprep.subr.mxu0 0.0
        %1145 = vmatpush1.msra.mxu0 0.0
        %1146 = vmatprep.subr.mxu0 0.0
        %1147 = vmatpush1.msra.mxu0 0.0
        %1148 = vmatprep.subr.mxu0 0.0
        %1149 = vmatpush1.msra.mxu0 0.0
        %1150 = vmatprep.subr.mxu0 0.0
        %1151 = vmatpush1.msra.mxu0 0.0
        %1152 = vmatprep.subr.mxu0 0.0
        %1153 = vmatpush1.msra.mxu0 0.0
        %1154 = vmatprep.subr.mxu0 0.0
        %1155 = vmatpush1.msra.mxu0 0.0
        %1156 = vmatprep.subr.mxu0 0.0
        %1157 = vmatpush1.msra.mxu0 0.0
        %1158 = vmatprep.subr.mxu0 0.0
        %1159 = vmatpush1.msra.mxu0 0.0
        %1160 = vmatprep.subr.mxu0 0.0
        %1161 = vmatpush1.msra.mxu0 0.0
        %1162 = vmatprep.subr.mxu0 0.0
        %1163 = vmatpush1.msra.mxu0 0.0
        %1164 = vmatprep.subr.mxu0 0.0
        %1165 = vmatpush1.msra.mxu0 0.0
        %1166 = vmatprep.subr.mxu0 0.0
        %1167 = vmatpush1.msra.mxu0 0.0
        %1168 = vmatprep.subr.mxu0 0.0
        %1169 = vmatpush1.msra.mxu0 0.0
        %1170 = vmatprep.subr.mxu0 0.0
        %1171 = vmatpush1.msra.mxu0 0.0
        %1172 = vmatprep.subr.mxu0 0.0
        %1173 = vmatpush1.msra.mxu0 0.0
        %1174 = vmatprep.subr.mxu0 0.0
        %1175 = vmatpush1.msra.mxu0 0.0
        %1176 = vmatprep.subr.mxu0 0.0
        %1177 = vmatpush1.msra.mxu0 0.0
        %1178 = vmatprep.subr.mxu0 0.0
        %1179 = vmatpush1.msra.mxu0 0.0
        %1180 = vmatprep.subr.mxu0 0.0
        %1181 = vmatpush1.msra.mxu0 0.0
        %1182 = vmatprep.subr.mxu0 0.0
        %1183 = vmatpush1.msra.mxu0 0.0
        %1184 = vmatprep.subr.mxu0 0.0
        %1185 = vmatpush1.msra.mxu0 0.0
        %1186 = vmatprep.subr.mxu0 0.0
        %1187 = vmatpush1.msra.mxu0 0.0
        %1188 = vmatprep.subr.mxu0 0.0
        %1189 = vmatpush1.msra.mxu0 0.0
        %1190 = vmatprep.subr.mxu0 0.0
        %1191 = vmatpush1.msra.mxu0 0.0
        %1192 = vmatprep.subr.mxu0 0.0
        %1193 = vmatpush1.msra.mxu0 0.0
        %1194 = vmatprep.subr.mxu0 0.0
        %1195 = vmatpush1.msra.mxu0 0.0
        %1196 = vmatprep.subr.mxu0 0.0
        %1197 = vmatpush1.msra.mxu0 0.0
        %1198 = vmatprep.subr.mxu0 0.0
        %1199 = vmatpush1.msra.mxu0 0.0
        %1200 = vmatprep.subr.mxu0 0.0
        %1201 = vmatpush1.msra.mxu0 0.0
        %1202 = vmatprep.subr.mxu0 0.0
        %1203 = vmatpush1.msra.mxu0 0.0
        %1204 = vmatprep.subr.mxu0 0.0
        %1205 = vmatpush1.msra.mxu0 0.0
        %1206 = vmatprep.mubr.f32.mxu0 0.0
        %1207 = vmatmul.mubr.f32.gmra.mrb[0].mxu0 %v1140
        %v1208 = vpop.f32.mrb[0].mxu0
        %v1209 = vadd.f32 0.0, %v1208
        %v1210 = vpop.f32.mrb[0].mxu0
        %1211 = vdwg.mxu0
        %v1213 = vsel %vm570, %v1209, 0
        %1215 = vmatprep.subr.mxu0 0.0
        %1216 = vmatpush1.msra.mxu0 %v566
        %1217 = vmatprep.subr.mxu0 0.0
        %1218 = vmatpush1.msra.mxu0 %v567
        %1219 = vmatprep.subr.mxu0 0.0
        %1220 = vmatpush1.msra.mxu0 0.0
        %1221 = vmatprep.subr.mxu0 0.0
        %1222 = vmatpush1.msra.mxu0 0.0
        %1223 = vmatprep.subr.mxu0 0.0
        %1224 = vmatpush1.msra.mxu0 0.0
        %1225 = vmatprep.subr.mxu0 0.0
        %1226 = vmatpush1.msra.mxu0 0.0
        %1227 = vmatprep.subr.mxu0 0.0
        %1228 = vmatpush1.msra.mxu0 0.0
        %1229 = vmatprep.subr.mxu0 0.0
        %1230 = vmatpush1.msra.mxu0 0.0
        %1231 = vmatprep.subr.mxu0 0.0
        %1232 = vmatpush1.msra.mxu0 0.0
        %1233 = vmatprep.subr.mxu0 0.0
        %1234 = vmatpush1.msra.mxu0 0.0
        %1235 = vmatprep.subr.mxu0 0.0
        %1236 = vmatpush1.msra.mxu0 0.0
        %1237 = vmatprep.subr.mxu0 0.0
        %1238 = vmatpush1.msra.mxu0 0.0
        %1239 = vmatprep.subr.mxu0 0.0
        %1240 = vmatpush1.msra.mxu0 0.0
        %1241 = vmatprep.subr.mxu0 0.0
        %1242 = vmatpush1.msra.mxu0 0.0
        %1243 = vmatprep.subr.mxu0 0.0
        %1244 = vmatpush1.msra.mxu0 0.0
        %1245 = vmatprep.subr.mxu0 0.0
        %1246 = vmatpush1.msra.mxu0 0.0
        %1247 = vmatprep.subr.mxu0 0.0
        %1248 = vmatpush1.msra.mxu0 0.0
        %1249 = vmatprep.subr.mxu0 0.0
        %1250 = vmatpush1.msra.mxu0 0.0
        %1251 = vmatprep.subr.mxu0 0.0
        %1252 = vmatpush1.msra.mxu0 0.0
        %1253 = vmatprep.subr.mxu0 0.0
        %1254 = vmatpush1.msra.mxu0 0.0
        %1255 = vmatprep.subr.mxu0 0.0
        %1256 = vmatpush1.msra.mxu0 0.0
        %1257 = vmatprep.subr.mxu0 0.0
        %1258 = vmatpush1.msra.mxu0 0.0
        %1259 = vmatprep.subr.mxu0 0.0
        %1260 = vmatpush1.msra.mxu0 0.0
        %1261 = vmatprep.subr.mxu0 0.0
        %1262 = vmatpush1.msra.mxu0 0.0
        %1263 = vmatprep.subr.mxu0 0.0
        %1264 = vmatpush1.msra.mxu0 0.0
        %1265 = vmatprep.subr.mxu0 0.0
        %1266 = vmatpush1.msra.mxu0 0.0
        %1267 = vmatprep.subr.mxu0 0.0
        %1268 = vmatpush1.msra.mxu0 0.0
        %1269 = vmatprep.subr.mxu0 0.0
        %1270 = vmatpush1.msra.mxu0 0.0
        %1271 = vmatprep.subr.mxu0 0.0
        %1272 = vmatpush1.msra.mxu0 0.0
        %1273 = vmatprep.subr.mxu0 0.0
        %1274 = vmatpush1.msra.mxu0 0.0
        %1275 = vmatprep.subr.mxu0 0.0
        %1276 = vmatpush1.msra.mxu0 0.0
        %1277 = vmatprep.subr.mxu0 0.0
        %1278 = vmatpush1.msra.mxu0 0.0
        %1279 = vmatprep.mubr.f32.mxu0 0.0
        %1280 = vmatmul.mubr.f32.gmra.mrb[0].mxu0 %v1213
        %v1281 = vpop.f32.mrb[0].mxu0
        %v1282 = vadd.f32 0.0, %v1281
        %v1283 = vpop.f32.mrb[0].mxu0
        %1284 = vdwg.mxu0
        %v1285 = vadd.f32 %v1043, %v1282
        %1286 = vrot.lane.b32.xlu0 %v408, 80
        %v1287 = vpop.permute.xlu0 %1286
        %1288 = vrot.lane.b32.xlu0 %v485, 80
        %v1289 = vpop.permute.xlu0 %1288
        %v1290 = vsel %vm570, %v1287, 0
        %v1292 = vsel %vm570, %v1289, 0
        %1294 = vmatprep.subr.mxu0 0.0
        %1295 = vmatpush1.xpose.msra.mxu0 %v1292
        %1296 = vmatprep.subr.mxu0 0.0
        %1297 = vmatpush1.xpose.msra.mxu0 0.0
        %1298 = vmatprep.subr.mxu0 0.0
        %1299 = vmatpush1.xpose.msra.mxu0 0.0
        %1300 = vmatprep.subr.mxu0 0.0
        %1301 = vmatpush1.xpose.msra.mxu0 0.0
        %1302 = vmatprep.subr.mxu0 0.0
        %1303 = vmatpush1.xpose.msra.mxu0 0.0
        %1304 = vmatprep.subr.mxu0 0.0
        %1305 = vmatpush1.xpose.msra.mxu0 0.0
        %1306 = vmatprep.subr.mxu0 0.0
        %1307 = vmatpush1.xpose.msra.mxu0 0.0
        %1308 = vmatprep.subr.mxu0 0.0
        %1309 = vmatpush1.xpose.msra.mxu0 0.0
        %1310 = vmatprep.subr.mxu0 0.0
        %1311 = vmatpush1.xpose.msra.mxu0 0.0
        %1312 = vmatprep.subr.mxu0 0.0
        %1313 = vmatpush1.xpose.msra.mxu0 0.0
        %1314 = vmatprep.subr.mxu0 0.0
        %1315 = vmatpush1.xpose.msra.mxu0 0.0
        %1316 = vmatprep.subr.mxu0 0.0
        %1317 = vmatpush1.xpose.msra.mxu0 0.0
        %1318 = vmatprep.subr.mxu0 0.0
        %1319 = vmatpush1.xpose.msra.mxu0 0.0
        %1320 = vmatprep.subr.mxu0 0.0
        %1321 = vmatpush1.xpose.msra.mxu0 0.0
        %1322 = vmatprep.subr.mxu0 0.0
        %1323 = vmatpush1.xpose.msra.mxu0 0.0
        %1324 = vmatprep.subr.mxu0 0.0
        %1325 = vmatpush1.xpose.msra.mxu0 0.0
        %1326 = vmatprep.subr.mxu0 0.0
        %1327 = vmatpush1.xpose.msra.mxu0 0.0
        %1328 = vmatprep.subr.mxu0 0.0
        %1329 = vmatpush1.xpose.msra.mxu0 0.0
        %1330 = vmatprep.subr.mxu0 0.0
        %1331 = vmatpush1.xpose.msra.mxu0 0.0
        %1332 = vmatprep.subr.mxu0 0.0
        %1333 = vmatpush1.xpose.msra.mxu0 0.0
        %1334 = vmatprep.subr.mxu0 0.0
        %1335 = vmatpush1.xpose.msra.mxu0 0.0
        %1336 = vmatprep.subr.mxu0 0.0
        %1337 = vmatpush1.xpose.msra.mxu0 0.0
        %1338 = vmatprep.subr.mxu0 0.0
        %1339 = vmatpush1.xpose.msra.mxu0 0.0
        %1340 = vmatprep.subr.mxu0 0.0
        %1341 = vmatpush1.xpose.msra.mxu0 0.0
        %1342 = vmatprep.subr.mxu0 0.0
        %1343 = vmatpush1.xpose.msra.mxu0 0.0
        %1344 = vmatprep.subr.mxu0 0.0
        %1345 = vmatpush1.xpose.msra.mxu0 0.0
        %1346 = vmatprep.subr.mxu0 0.0
        %1347 = vmatpush1.xpose.msra.mxu0 0.0
        %1348 = vmatprep.subr.mxu0 0.0
        %1349 = vmatpush1.xpose.msra.mxu0 0.0
        %1350 = vmatprep.subr.mxu0 0.0
        %1351 = vmatpush1.xpose.msra.mxu0 0.0
        %1352 = vmatprep.subr.mxu0 0.0
        %1353 = vmatpush1.xpose.msra.mxu0 0.0
        %1354 = vmatprep.subr.mxu0 0.0
        %1355 = vmatpush1.xpose.msra.mxu0 0.0
        %1356 = vmatprep.subr.mxu0 0.0
        %1357 = vmatpush1.xpose.msra.mxu0 0.0
        %1358 = vmatprep.mubr.f32.mxu0 0.0
        %1359 = vmatmul.mubr.f32.gmra.mrb[0].mxu0 %v1290
        %v1360 = vpop.f32.mrb[0].mxu0
        %v1361 = vadd.f32 0.0, %v1360
        %v1362 = vpop.f32.mrb[0].mxu0
        %1363 = vdwg.mxu0
        %v1364 = vmul.f32 %v1361, 0.17677669
        %v1365 = vsel %vm648, %v1364, -inf
        %1366 = vmax.xlane.f32.xlu0 %v1365
        %v1367 = vpop.xlane.xlu0 %1366
        %v1368 = vsub.f32 %v1364, %v1367
        %v1369 = vmul.f32 %v1368, 1.442695
        %v1370 = vpow.pop %v1369
        %v1371 = vsel %vm648, %v1370, 0.0
        %1372 = vadd.xlane.f32.xlu0 %v1371
        %v1373 = vpop.xlane.xlu0 %1372
        %v1374 = vrcp.pop %v1373
        %v1375 = vmul.f32 %v1370, %v1374
        %1376 = vrot.lane.b32.xlu0 %v559, 80
        %v1377 = vpop.permute.xlu0 %1376
        %v1380 = vsel %vm648, %v1375, 0
        %1382 = vmatprep.subr.mxu0 0.0
        %1383 = vmatpush1.msra.mxu0 %v1377
        %1384 = vmatprep.subr.mxu0 0.0
        %1385 = vmatpush1.msra.mxu0 0.0
        %1386 = vmatprep.subr.mxu0 0.0
        %1387 = vmatpush1.msra.mxu0 0.0
        %1388 = vmatprep.subr.mxu0 0.0
        %1389 = vmatpush1.msra.mxu0 0.0
        %1390 = vmatprep.subr.mxu0 0.0
        %1391 = vmatpush1.msra.mxu0 0.0
        %1392 = vmatprep.subr.mxu0 0.0
        %1393 = vmatpush1.msra.mxu0 0.0
        %1394 = vmatprep.subr.mxu0 0.0
        %1395 = vmatpush1.msra.mxu0 0.0
        %1396 = vmatprep.subr.mxu0 0.0
        %1397 = vmatpush1.msra.mxu0 0.0
        %1398 = vmatprep.subr.mxu0 0.0
        %1399 = vmatpush1.msra.mxu0 0.0
        %1400 = vmatprep.subr.mxu0 0.0
        %1401 = vmatpush1.msra.mxu0 0.0
        %1402 = vmatprep.subr.mxu0 0.0
        %1403 = vmatpush1.msra.mxu0 0.0
        %1404 = vmatprep.subr.mxu0 0.0
        %1405 = vmatpush1.msra.mxu0 0.0
        %1406 = vmatprep.subr.mxu0 0.0
        %1407 = vmatpush1.msra.mxu0 0.0
        %1408 = vmatprep.subr.mxu0 0.0
        %1409 = vmatpush1.msra.mxu0 0.0
        %1410 = vmatprep.subr.mxu0 0.0
        %1411 = vmatpush1.msra.mxu0 0.0
        %1412 = vmatprep.subr.mxu0 0.0
        %1413 = vmatpush1.msra.mxu0 0.0
        %1414 = vmatprep.subr.mxu0 0.0
        %1415 = vmatpush1.msra.mxu0 0.0
        %1416 = vmatprep.subr.mxu0 0.0
        %1417 = vmatpush1.msra.mxu0 0.0
        %1418 = vmatprep.subr.mxu0 0.0
        %1419 = vmatpush1.msra.mxu0 0.0
        %1420 = vmatprep.subr.mxu0 0.0
        %1421 = vmatpush1.msra.mxu0 0.0
        %1422 = vmatprep.subr.mxu0 0.0
        %1423 = vmatpush1.msra.mxu0 0.0
        %1424 = vmatprep.subr.mxu0 0.0
        %1425 = vmatpush1.msra.mxu0 0.0
        %1426 = vmatprep.subr.mxu0 0.0
        %1427 = vmatpush1.msra.mxu0 0.0
        %1428 = vmatprep.subr.mxu0 0.0
        %1429 = vmatpush1.msra.mxu0 0.0
        %1430 = vmatprep.subr.mxu0 0.0
        %1431 = vmatpush1.msra.mxu0 0.0
        %1432 = vmatprep.subr.mxu0 0.0
        %1433 = vmatpush1.msra.mxu0 0.0
        %1434 = vmatprep.subr.mxu0 0.0
        %1435 = vmatpush1.msra.mxu0 0.0
        %1436 = vmatprep.subr.mxu0 0.0
        %1437 = vmatpush1.msra.mxu0 0.0
        %1438 = vmatprep.subr.mxu0 0.0
        %1439 = vmatpush1.msra.mxu0 0.0
        %1440 = vmatprep.subr.mxu0 0.0
        %1441 = vmatpush1.msra.mxu0 0.0
        %1442 = vmatprep.subr.mxu0 0.0
        %1443 = vmatpush1.msra.mxu0 0.0
        %1444 = vmatprep.subr.mxu0 0.0
        %1445 = vmatpush1.msra.mxu0 0.0
        %1446 = vmatprep.mubr.f32.mxu0 0.0
        %1447 = vmatmul.mubr.f32.gmra.mrb[0].mxu0 %v1380
        %v1448 = vpop.f32.mrb[0].mxu0
        %v1449 = vadd.f32 0.0, %v1448
        %v1450 = vpop.f32.mrb[0].mxu0
        %1451 = vdwg.mxu0
        %v1453 = vsel %vm570, %v1449, 0
        %1455 = vmatprep.subr.mxu0 0.0
        %1456 = vmatpush1.msra.mxu0 %v568
        %1457 = vmatprep.subr.mxu0 0.0
        %1458 = vmatpush1.msra.mxu0 %v569
        %1459 = vmatprep.subr.mxu0 0.0
        %1460 = vmatpush1.msra.mxu0 0.0
        %1461 = vmatprep.subr.mxu0 0.0
        %1462 = vmatpush1.msra.mxu0 0.0
        %1463 = vmatprep.subr.mxu0 0.0
        %1464 = vmatpush1.msra.mxu0 0.0
        %1465 = vmatprep.subr.mxu0 0.0
        %1466 = vmatpush1.msra.mxu0 0.0
        %1467 = vmatprep.subr.mxu0 0.0
        %1468 = vmatpush1.msra.mxu0 0.0
        %1469 = vmatprep.subr.mxu0 0.0
        %1470 = vmatpush1.msra.mxu0 0.0
        %1471 = vmatprep.subr.mxu0 0.0
        %1472 = vmatpush1.msra.mxu0 0.0
        %1473 = vmatprep.subr.mxu0 0.0
        %1474 = vmatpush1.msra.mxu0 0.0
        %1475 = vmatprep.subr.mxu0 0.0
        %1476 = vmatpush1.msra.mxu0 0.0
        %1477 = vmatprep.subr.mxu0 0.0
        %1478 = vmatpush1.msra.mxu0 0.0
        %1479 = vmatprep.subr.mxu0 0.0
        %1480 = vmatpush1.msra.mxu0 0.0
        %1481 = vmatprep.subr.mxu0 0.0
        %1482 = vmatpush1.msra.mxu0 0.0
        %1483 = vmatprep.subr.mxu0 0.0
        %1484 = vmatpush1.msra.mxu0 0.0
        %1485 = vmatprep.subr.mxu0 0.0
        %1486 = vmatpush1.msra.mxu0 0.0
        %1487 = vmatprep.subr.mxu0 0.0
        %1488 = vmatpush1.msra.mxu0 0.0
        %1489 = vmatprep.subr.mxu0 0.0
        %1490 = vmatpush1.msra.mxu0 0.0
        %1491 = vmatprep.subr.mxu0 0.0
        %1492 = vmatpush1.msra.mxu0 0.0
        %1493 = vmatprep.subr.mxu0 0.0
        %1494 = vmatpush1.msra.mxu0 0.0
        %1495 = vmatprep.subr.mxu0 0.0
        %1496 = vmatpush1.msra.mxu0 0.0
        %1497 = vmatprep.subr.mxu0 0.0
        %1498 = vmatpush1.msra.mxu0 0.0
        %1499 = vmatprep.subr.mxu0 0.0
        %1500 = vmatpush1.msra.mxu0 0.0
        %1501 = vmatprep.subr.mxu0 0.0
        %1502 = vmatpush1.msra.mxu0 0.0
        %1503 = vmatprep.subr.mxu0 0.0
        %1504 = vmatpush1.msra.mxu0 0.0
        %1505 = vmatprep.subr.mxu0 0.0
        %1506 = vmatpush1.msra.mxu0 0.0
        %1507 = vmatprep.subr.mxu0 0.0
        %1508 = vmatpush1.msra.mxu0 0.0
        %1509 = vmatprep.subr.mxu0 0.0
        %1510 = vmatpush1.msra.mxu0 0.0
        %1511 = vmatprep.subr.mxu0 0.0
        %1512 = vmatpush1.msra.mxu0 0.0
        %1513 = vmatprep.subr.mxu0 0.0
        %1514 = vmatpush1.msra.mxu0 0.0
        %1515 = vmatprep.subr.mxu0 0.0
        %1516 = vmatpush1.msra.mxu0 0.0
        %1517 = vmatprep.subr.mxu0 0.0
        %1518 = vmatpush1.msra.mxu0 0.0
        %1519 = vmatprep.mubr.f32.mxu0 0.0
        %1520 = vmatmul.mubr.f32.gmra.mrb[0].mxu0 %v1453
        %v1521 = vpop.f32.mrb[0].mxu0
        %v1522 = vadd.f32 0.0, %v1521
        %v1523 = vpop.f32.mrb[0].mxu0
        %1524 = vdwg.mxu0
        %v1525 = vadd.f32 %v1285, %v1522
        %v1526 = vld [vmem:[%s6] sm:$0x1]
        %v1528 = vlaneseq
        %v1529 = vshrl.u32 %v1528, 7
        %v1530 = vsub.s32 0, %v1529
        %v1531 = vrot.slane %v1526, %v1530
        %v1533 = vadd.f32 %v1525, %v1531
        %1534 = vst.msk [vmem:[%s330] sm:$0xff] %vm337, %v1533
        %s1535 = sand.u32 %s192, 1
        %s1536 = scalar_lea.sflag [#allocation4], %s1535
        %s1537 = sand.u32 %s192, 1
        %s1538 = smul.addr %s1537, 8
        %s1539 = scalar_lea.vmem [#allocation7], %s1538
        // Predicated region
        $region57: #{tpu_custom_call.1} parent=47 // pred_check
          %p1540 = pneg %p202
        $region58: #{tpu_custom_call.1} parent=47 // pred_check_branch
          %1542 = sbr.rel (%p1540) target = $region60
        $region59: #{tpu_custom_call.1} parent=47 // pred_region
          %s1544 = ssub.s32 128, 128
          %1545 = vsyncadd %s1536, %s1544
          %s1546 = smul.addr %s27, 128
          %s1547 = scalar_lea.hbm %s7, %s1546
          %s1549 = sshll.u32 %s1539, 4
          %s1550 = int_to_ptr.vmem [resolvable:$true] %s1549
          %1552 = dma.vmem_to_hbm [thread:$0]  %s1550, 128, %s1547, %s1536
        $region60: #{tpu_custom_call.1} parent=47 // pred_fallthru
          _
      $region48: #{tpu_custom_call.1} parent=5 // pred_fallthru
        _
      %p1553 = scmp.le.s32.totalorder 2, %s22
      // Predicated region
      $region61: #{tpu_custom_call.1} parent=5 // pred_check
        %p1554 = pneg %p1553
      $region62: #{tpu_custom_call.1} parent=5 // pred_check_branch
        %1556 = sbr.rel (%p1554) target = $region64
      $region63: #{tpu_custom_call.1} parent=5 // pred_region
        %s1557 = ssub.s32 %s22, 2
        // Predicated region
        $region65: #{tpu_custom_call.1} parent=63 // pred_check
          %p1558 = pneg %p208
        $region66: #{tpu_custom_call.1} parent=63 // pred_check_branch
          %1560 = sbr.rel (%p1558) target = $region68
        $region67: #{tpu_custom_call.1} parent=63 // pred_region
          %s1561 = sand.u32 %s193, 1
          %s1562 = scalar_lea.sflag [#allocation4], %s1561
          %s1563 = sand.u32 %s193, 1
          %s1564 = smul.addr %s1563, 8
          %s1565 = scalar_lea.vmem [#allocation7], %s1564
          %1566 = dma.done %s1562, 128
        $region68: #{tpu_custom_call.1} parent=63 // pred_fallthru
          _
      $region64: #{tpu_custom_call.1} parent=5 // pred_fallthru
        _
    $region6: #{tpu_custom_call.1} parent=1 // loop_footer
      %s26 = sadd.s32 1, %s22
    $region7: #{tpu_custom_call.1} parent=1 // loop_footer_branch
      %21 = sbr.rel target = $region3
    $region8: #{tpu_custom_call.1} parent=1 // loop_exit
      _
    %1567 = vsyncpa [#allocation3], 1
    %s1568 = scalar_lea.sflag [#allocation3], 1
    %1569 = vsyncpa %s1568, 1
    %1570 = vsyncpa [#allocation6], 1
    %s1571 = scalar_lea.sflag [#allocation6], 1
    %1572 = vsyncpa %s1571, 1
    %1573 = vsyncpa [#allocation4], 1
    %s1574 = scalar_lea.sflag [#allocation4], 1
    %1575 = vsyncpa %s1574, 1

</llo_original>
